<compile_context>
chip_gen: v7x
topology: tpu7x:2x2x1
jax: 0.10.0
libtpu: 0.0.40
codegen_flags: <defaults>
</compile_context>

<pallas_src>
from functools import partial

import jax
import jax.numpy as jnp
from jax.experimental import pallas as pl
from jax.experimental.pallas import tpu as pltpu


def _vmem_limit_bytes():
    """Scoped-VMEM budget: ~3/4 of physical VMEM, capped (48 MiB v7x, ~96 MiB v5e/v6e)."""
    phys = 64 * 1024 * 1024
    try:
        info = pltpu.get_tpu_info()
        phys = int(getattr(info, "vmem_capacity_bytes", phys) or phys)
    except Exception:
        pass
    return max(32 * 1024 * 1024, min(phys * 3 // 4, 100 * 1024 * 1024))


_VMEM_LIMIT = _vmem_limit_bytes()


def _round_up(x, m):
    return (x + m - 1) // m * m


# ----------------------------------------------------------------------------- kernels
def _conv_stats_kernel(p_ref, w_ref, y_ref, s1_ref, s2_ref):
    """One row-block of the grouped im2col matmul + global BN-stat accumulation.

    p_ref : (TM, G*K)      bf16 patch rows          (K = KH*KW*Cin, G adjacent W positions/row)
    w_ref : (G*K, G*Cout)  bf16 group-block-diagonal weights (grid-resident)
    y_ref : (TM, G*Cout)   bf16 pre-activation conv output (lane-dense store)
    s1/s2 : (1, G*Cout)    f32 resident accumulators: column sum / sum of squares
    """
    y = jnp.dot(p_ref[...], w_ref[...], preferred_element_type=jnp.float32)
    y_ref[...] = y.astype(y_ref.dtype)

    @pl.when(pl.program_id(0) == 0)
    def _init():
        s1_ref[...] = jnp.zeros_like(s1_ref)
        s2_ref[...] = jnp.zeros_like(s2_ref)

    s1_ref[...] += jnp.sum(y, axis=0, keepdims=True)
    s2_ref[...] += jnp.sum(y * y, axis=0, keepdims=True)


def _conv_kernel(p_ref, w_ref, y_ref):
    """Plain grouped im2col matmul (last_conv path; bias added in the wrapper)."""
    y_ref[...] = jnp.dot(p_ref[...], w_ref[...],
                         preferred_element_type=jnp.float32).astype(y_ref.dtype)


# ----------------------------------------------------------------------------- wrappers
def _conv2d_lane_dense(x_nhwc, weight, *, padding=1, block_rows=256,
                       mxu_dtype=jnp.bfloat16, with_stats=True):
    """3x3 'same' conv on NHWC input via a grouped im2col matmul.

    Returns lane-dense (M_pad, G*Cout) conv-output rows (+ per-lane sum / sum-of-squares
    accumulators when with_stats) plus shape metadata."""
    N, H, W, Cin = x_nhwc.shape
    Cout, _, KH, KW = weight.shape
    Ho = H + 2 * padding - KH + 1
    Wo = W + 2 * padding - KW + 1
    K = KH * KW * Cin

    # Lane group: pack G adjacent W positions into the lane axis so the output slab is
    # ~128 lanes wide; G must divide Wo.  Cout >= 128 -> G = 1 (dense GEMM).
    g_target = max(1, 128 // Cout)
    G = 1
    for d in range(min(g_target, Wo), 0, -1):
        if Wo % d == 0:
            G = d
            break
    GK, GC = G * K, G * Cout

    # im2col pre-pack directly in bf16 (halves HBM write traffic).  XLA fuses the previous
    # layer's affine/ReLU with this pad + shifted slices + reshape under the same jit.
    xp = jnp.pad(x_nhwc.astype(mxu_dtype),
                 ((0, 0), (padding, padding), (padding, padding), (0, 0)))
    patches = jnp.concatenate(
        [xp[:, kh:kh + Ho, kw:kw + Wo, :] for kh in range(KH) for kw in range(KW)],
        axis=-1)                                     # (N, Ho, Wo, K), (kh, kw, cin) order
    M = N * Ho * (Wo // G)
    p_rows = patches.reshape(M, GK)                  # contiguous reshape

    # Row tile: multiple of 8 (multiple of 128 once M is large); pad rows so the tile divides M.
    tm = min(block_rows, _round_up(M, 8))
    M_pad = _round_up(M, tm)
    if M_pad != M:
        p_rows = jnp.pad(p_rows, ((0, M_pad - M), (0, 0)))   # zero rows: stats unaffected
    nb = M_pad // tm

    # Group-block-diagonal weight: out[r, g*Cout + c] = sum_k p[r, g*K + k] * w2[k, c].
    w2 = jnp.transpose(weight, (2, 3, 1, 0)).reshape(K, Cout).astype(jnp.float32)
    w_bd = jnp.kron(jnp.eye(G, dtype=jnp.float32), w2).astype(mxu_dtype)   # (G*K, G*Cout)

    in_specs = [pl.BlockSpec((tm, GK), lambda i: (i, 0)),
                pl.BlockSpec((GK, GC), lambda i: (0, 0))]      # weight stays resident

    if with_stats:
        y_rows, s1, s2 = pl.pallas_call(
            _conv_stats_kernel,
            out_shape=(jax.ShapeDtypeStruct((M_pad, GC), mxu_dtype),
                       jax.ShapeDtypeStruct((1, GC), jnp.float32),
                       jax.ShapeDtypeStruct((1, GC), jnp.float32)),
            grid=(nb,),
            in_specs=in_specs,
            out_specs=(pl.BlockSpec((tm, GC), lambda i: (i, 0)),
                       pl.BlockSpec((1, GC), lambda i: (0, 0)),     # resident accumulators
                       pl.BlockSpec((1, GC), lambda i: (0, 0))),
            compiler_params=pltpu.CompilerParams(
                # Stats accumulate sequentially across row blocks.
                # TODO(synk): v7x megacore -- split rows over a leading size-2 "parallel" axis
                # with per-core partial s1/s2 outputs reduced in the wrapper.
                dimension_semantics=("arbitrary",),
                vmem_limit_bytes=_VMEM_LIMIT),
        )(p_rows, w_bd)
        return y_rows, s1, s2, (N, Ho, Wo, Cout, G, M)

    y_rows = pl.pallas_call(
        _conv_kernel,
        out_shape=jax.ShapeDtypeStruct((M_pad, GC), jnp.float32),
        grid=(nb,),
        in_specs=in_specs,
        out_specs=pl.BlockSpec((tm, GC), lambda i: (i, 0)),
        compiler_params=pltpu.CompilerParams(
            dimension_semantics=("parallel",),       # independent row blocks
            vmem_limit_bytes=_VMEM_LIMIT),
    )(p_rows, w_bd)
    return y_rows, None, None, (N, Ho, Wo, Cout, G, M)


def conv_bn_relu_nhwc(x_nhwc, weight, gamma, beta, *, eps=1e-5,
                      block_rows=256, mxu_dtype=jnp.bfloat16):
    """ConvBNReLU (training-mode batch statistics) on NHWC activations.

    The conv bias is dropped (exactly cancelled by the BN mean).  The folded BN affine + ReLU
    is plain jnp so XLA fuses it into the next layer's patch pre-pack (no extra HBM pass)."""
    y_rows, s1, s2, (N, Ho, Wo, Cout, G, M) = _conv2d_lane_dense(
        x_nhwc, weight, block_rows=block_rows, mxu_dtype=mxu_dtype, with_stats=True)

    count = float(N * Ho * Wo)
    s1c = s1.reshape(G, Cout).sum(axis=0)
    s2c = s2.reshape(G, Cout).sum(axis=0)
    mean = s1c / count
    # TODO(synk): single-pass E[y^2]-E[y]^2 can cancel for large-mean activations; switch to a
    # shifted / two-pass variance if production channel counts make this an issue.
    var = jnp.maximum(s2c / count - mean * mean, 0.0)   # biased batch variance
    scale = gamma.astype(jnp.float32) * jax.lax.rsqrt(var + eps)
    shift = beta.astype(jnp.float32) - mean * scale

    y = y_rows[:M].reshape(N, Ho, Wo, Cout).astype(jnp.float32)
    return jnp.maximum(y * scale + shift, 0.0)


def conv2d_nhwc(x_nhwc, weight, bias, *, block_rows=256, mxu_dtype=jnp.bfloat16):
    """Plain Conv2d (3x3, pad=1) on NHWC activations (last_conv path); bias added in wrapper."""
    y_rows, _, _, (N, Ho, Wo, Cout, G, M) = _conv2d_lane_dense(
        x_nhwc, weight, block_rows=block_rows, mxu_dtype=mxu_dtype, with_stats=False)
    y = y_rows[:M].reshape(N, Ho, Wo, Cout) + bias.astype(jnp.float32)
    return y.astype(x_nhwc.dtype)


def max_unpool2d_nhwc(x_nhwc, idx_nhwc, stride=2):
    """F.max_unpool2d(kernel_size=2, stride=2) on NHWC tensors (indices flat in output plane)."""
    # TODO(synk): data-dependent scatter has no clean Pallas TPU equivalent; implemented
    # gather-free (compare upsampled indices against output positions) in plain JAX.
    N, H, W, C = x_nhwc.shape
    Ho, Wo = H * stride, W * stride
    x_up = jnp.repeat(jnp.repeat(x_nhwc, stride, axis=1), stride, axis=2)
    i_up = jnp.repeat(jnp.repeat(idx_nhwc, stride, axis=1), stride, axis=2)
    flat = (jnp.arange(Ho, dtype=idx_nhwc.dtype)[:, None] * Wo
            + jnp.arange(Wo, dtype=idx_nhwc.dtype)[None, :])
    return jnp.where(i_up == flat[None, :, :, None], x_up, jnp.zeros((), x_nhwc.dtype))


@partial(jax.jit, static_argnames=("is_last_block",))
def decoder_block_forward(x_nchw, indices_nchw, params, is_last_block=False):
    """DecoderBlock.forward: unpool -> decoder ConvBNReLU stack (-> plain last_conv if last)."""
    # One NCHW->NHWC conversion at entry; activations stay NHWC / lane-dense through every layer.
    x = jnp.transpose(x_nchw, (0, 2, 3, 1))
    idx = jnp.transpose(indices_nchw, (0, 2, 3, 1)).astype(jnp.int32)
    x = max_unpool2d_nhwc(x, idx)

    decoder = params["decoder"]
    if is_last_block:
        for (w, _b, g, bt) in decoder[:-1]:
            x = conv_bn_relu_nhwc(x, w, g, bt)
        w, b = params["last_conv"]
        x = conv2d_nhwc(x, w, b)
    else:
        for (w, _b, g, bt) in decoder:
            x = conv_bn_relu_nhwc(x, w, g, bt)
    return jnp.transpose(x, (0, 3, 1, 2))                 # single NHWC->NCHW at exit


# ----------------------------------------------------------------------------- pure-JAX reference
def _conv2d_ref(x, w, b):
    y = jax.lax.conv_general_dilated(
        x, w, window_strides=(1, 1), padding=[(1, 1), (1, 1)],
        dimension_numbers=("NCHW", "OIHW", "NCHW"))
    return y + b.reshape(1, -1, 1, 1)


def _conv_bn_relu_ref(x, w, b, g, bt, eps=1e-5):
    y = _conv2d_ref(x, w, b)
    mean = jnp.mean(y, axis=(0, 2, 3), keepdims=True)
    var = jnp.mean((y - mean) ** 2, axis=(0, 2, 3), keepdims=True)
    y = (y - mean) * jax.lax.rsqrt(var + eps)
    y = y * g.reshape(1, -1, 1, 1) + bt.reshape(1, -1, 1, 1)
    return jnp.maximum(y, 0.0)


def _max_unpool2d_ref(x, idx):
    N, C, H, W = x.shape
    out = jnp.zeros((N, C, 4 * H * W), x.dtype)
    scatter = lambda o, i, v: o.at[i].set(v)
    out = jax.vmap(jax.vmap(scatter))(out, idx.reshape(N, C, -1), x.reshape(N, C, -1))
    return out.reshape(N, C, 2 * H, 2 * W)


def _decoder_block_ref(x, idx, params, is_last_block=False):
    x = _max_unpool2d_ref(x, idx)
    decoder = params["decoder"]
    if is_last_block:
        for (w, b, g, bt) in decoder[:-1]:
            x = _conv_bn_relu_ref(x, w, b, g, bt)
        w, b = params["last_conv"]
        x = _conv2d_ref(x, w, b)
    else:
        for (w, b, g, bt) in decoder:
            x = _conv_bn_relu_ref(x, w, b, g, bt)
    return x


# ----------------------------------------------------------------------------- demo / check
if __name__ == "__main__":
    key = jax.random.PRNGKey(0)
    kx, kd1, kd2, kp = jax.random.split(key, 4)

    # DecoderBlock(in_channels=4, out_channels=8, num_layers=2); encoder feature 8x8 -> 16x16.
    N, Cin, Cout, Hp, Wp = 2, 4, 8, 8, 8
    x = jax.random.normal(kx, (N, Cin, Hp, Wp), dtype=jnp.float32)

    # max_pool2d(return_indices=True)-style indices: each 2x2 window picks one of its 4 cells.
    dh = jax.random.randint(kd1, (N, Cin, Hp, Wp), 0, 2)
    dw = jax.random.randint(kd2, (N, Cin, Hp, Wp), 0, 2)
    hh = jnp.arange(Hp).reshape(1, 1, Hp, 1)
    ww = jnp.arange(Wp).reshape(1, 1, 1, Wp)
    indices = ((2 * hh + dh) * (2 * Wp) + (2 * ww + dw)).astype(jnp.int32)

    def conv_init(k, cout, cin):
        kw_, kb_ = jax.random.split(k)
        bound = (cin * 9) ** -0.5
        w = jax.random.uniform(kw_, (cout, cin, 3, 3), minval=-bound, maxval=bound,
                               dtype=jnp.float32)
        b = jax.random.uniform(kb_, (cout,), minval=-bound, maxval=bound, dtype=jnp.float32)
        return w, b

    k1, k2, k3 = jax.random.split(kp, 3)
    w1, b1 = conv_init(k1, Cin, Cin)     # ConvBNReLU(in, in)
    w2, b2 = conv_init(k2, Cout, Cin)    # ConvBNReLU(in, out)
    wl, bl = conv_init(k3, Cout, Cin)    # last_conv
    params = {
        "decoder": [(w1, b1, jnp.ones((Cin,), jnp.float32), jnp.zeros((Cin,), jnp.float32)),
                    (w2, b2, jnp.ones((Cout,), jnp.float32), jnp.zeros((Cout,), jnp.float32))],
        "last_conv": (wl, bl),
    }

    def check(a, b):
        max_err = float(jnp.max(jnp.abs(a - b)))
        rel = float(jnp.linalg.norm(a - b) / (jnp.linalg.norm(b) + 1e-12))
        # Tolerance reflects bf16 MXU inputs / bf16 intermediates (f32 accumulation).
        assert max_err < 1e-1 and rel < 5e-2, (max_err, rel)

    out = jax.block_until_ready(decoder_block_forward(x, indices, params, is_last_block=False))
    assert out.shape == (N, Cout, 2 * Hp, 2 * Wp), out.shape
    check(out, _decoder_block_ref(x, indices, params, is_last_block=False))

    out_last = jax.block_until_ready(decoder_block_forward(x, indices, params, is_last_block=True))
    assert out_last.shape == (N, Cout, 2 * Hp, 2 * Wp), out_last.shape
    check(out_last, _decoder_block_ref(x, indices, params, is_last_block=True))

    print("KERNEL_OK")
</pallas_src>

<mosaic_0001>
module attributes {stable_mosaic.version = 11 : i64} {
  func.func @_conv_stats_kernel(%arg0: i32, %arg1: memref<32x576xbf16, #tpu.memory_space<vmem>>, %arg2: memref<576x64xbf16, #tpu.memory_space<vmem>>, %arg3: memref<32x64xbf16, #tpu.memory_space<vmem>>, %arg4: memref<1x64xf32, #tpu.memory_space<vmem>>, %arg5: memref<1x64xf32, #tpu.memory_space<vmem>>) attributes {dimension_semantics = [#tpu.dimension_semantics<arbitrary>], iteration_bounds = array<i64: 1>, scalar_prefetch = 0 : i64, scratch_operands = 0 : i64, tpu.core_type = #tpu.core_type<tc>, window_params = [{transform_indices = @transform_0, window_bounds = array<i64: 32, 576>}, {pipeline_mode = #tpu.pipeline_mode<synchronous>, transform_indices = @transform_1, window_bounds = array<i64: 576, 64>}, {transform_indices = @transform_2, window_bounds = array<i64: 32, 64>}, {pipeline_mode = #tpu.pipeline_mode<synchronous>, transform_indices = @transform_3, window_bounds = array<i64: 1, 64>}, {pipeline_mode = #tpu.pipeline_mode<synchronous>, transform_indices = @transform_4, window_bounds = array<i64: 1, 64>}]} {
    %c0 = arith.constant 0 : index
    %c0_0 = arith.constant 0 : index
    %0 = vector.load %arg1[%c0, %c0_0] : memref<32x576xbf16, #tpu.memory_space<vmem>>, vector<32x576xbf16>
    %c0_1 = arith.constant 0 : index
    %c0_2 = arith.constant 0 : index
    %1 = vector.load %arg2[%c0_1, %c0_2] : memref<576x64xbf16, #tpu.memory_space<vmem>>, vector<576x64xbf16>
    %cst = arith.constant dense<0.000000e+00> : vector<32x64xf32>
    %2 = tpu.matmul %0, %1, %cst {dimension_numbers = #tpu.dot_dimension_numbers<[1], [0], [0], [1], [0, 0, 1, 1], [], []>} : vector<32x576xbf16>, vector<576x64xbf16>, vector<32x64xf32> -> vector<32x64xf32>
    %3 = arith.truncf %2 : vector<32x64xf32> to vector<32x64xbf16>
    %c0_3 = arith.constant 0 : index
    %c0_4 = arith.constant 0 : index
    %4 = vector.load %arg3[%c0_3, %c0_4] : memref<32x64xbf16, #tpu.memory_space<vmem>>, vector<32x64xbf16>
    tpu.vector_store %arg3[%c0_3, %c0_4], %3 {strides = array<i32>} : memref<32x64xbf16, #tpu.memory_space<vmem>>, vector<32x64xbf16>,
    %c0_i32 = arith.constant 0 : i32
    %5 = arith.cmpi eq, %arg0, %c0_i32 : i32
    %6 = arith.extui %5 : i1 to i32
    %c0_i32_5 = arith.constant 0 : i32
    %7 = arith.cmpi ne, %6, %c0_i32_5 : i32
    scf.if %7 {
      %cst_16 = arith.constant 0.000000e+00 : f32
      %19 = vector.broadcast %cst_16 : f32 to vector<1x64xf32>
      %c0_17 = arith.constant 0 : index
      %c0_18 = arith.constant 0 : index
      %20 = vector.load %arg4[%c0_17, %c0_18] : memref<1x64xf32, #tpu.memory_space<vmem>>, vector<1x64xf32>
      tpu.vector_store %arg4[%c0_17, %c0_18], %19 {strides = array<i32>} : memref<1x64xf32, #tpu.memory_space<vmem>>, vector<1x64xf32>,
      %cst_19 = arith.constant 0.000000e+00 : f32
      %21 = vector.broadcast %cst_19 : f32 to vector<1x64xf32>
      %c0_20 = arith.constant 0 : index
      %c0_21 = arith.constant 0 : index
      %22 = vector.load %arg5[%c0_20, %c0_21] : memref<1x64xf32, #tpu.memory_space<vmem>>, vector<1x64xf32>
      tpu.vector_store %arg5[%c0_20, %c0_21], %21 {strides = array<i32>} : memref<1x64xf32, #tpu.memory_space<vmem>>, vector<1x64xf32>,
    } else {
    }
    %c0_6 = arith.constant 0 : index
    %c0_7 = arith.constant 0 : index
    %8 = vector.load %arg4[%c0_6, %c0_7] : memref<1x64xf32, #tpu.memory_space<vmem>>, vector<1x64xf32>
    %cst_8 = arith.constant dense<0.000000e+00> : vector<64xf32>
    %9 = vector.multi_reduction <add>, %2, %cst_8 [0] : vector<32x64xf32> to vector<64xf32>
    %10 = vector.shape_cast %9 : vector<64xf32> to vector<1x64xf32>
    %11 = arith.addf %8, %10 : vector<1x64xf32>
    %c0_9 = arith.constant 0 : index
    %c0_10 = arith.constant 0 : index
    %12 = vector.load %arg4[%c0_9, %c0_10] : memref<1x64xf32, #tpu.memory_space<vmem>>, vector<1x64xf32>
    tpu.vector_store %arg4[%c0_9, %c0_10], %11 {strides = array<i32>} : memref<1x64xf32, #tpu.memory_space<vmem>>, vector<1x64xf32>,
    %c0_11 = arith.constant 0 : index
    %c0_12 = arith.constant 0 : index
    %13 = vector.load %arg5[%c0_11, %c0_12] : memref<1x64xf32, #tpu.memory_space<vmem>>, vector<1x64xf32>
    %14 = arith.mulf %2, %2 : vector<32x64xf32>
    %cst_13 = arith.constant dense<0.000000e+00> : vector<64xf32>
    %15 = vector.multi_reduction <add>, %14, %cst_13 [0] : vector<32x64xf32> to vector<64xf32>
    %16 = vector.shape_cast %15 : vector<64xf32> to vector<1x64xf32>
    %17 = arith.addf %13, %16 : vector<1x64xf32>
    %c0_14 = arith.constant 0 : index
    %c0_15 = arith.constant 0 : index
    %18 = vector.load %arg5[%c0_14, %c0_15] : memref<1x64xf32, #tpu.memory_space<vmem>>, vector<1x64xf32>
    tpu.vector_store %arg5[%c0_14, %c0_15], %17 {strides = array<i32>} : memref<1x64xf32, #tpu.memory_space<vmem>>, vector<1x64xf32>,
    return
  }
  func.func @transform_0(%arg0: i32) -> (i32, i32) {
    %c0_i32 = arith.constant 0 : i32
    %c0_i32_0 = arith.constant 0 : i32
    return %arg0, %c0_i32 : i32, i32
  }
  func.func @transform_1(%arg0: i32) -> (i32, i32) {
    %c0_i32 = arith.constant 0 : i32
    %c0_i32_0 = arith.constant 0 : i32
    %c0_i32_1 = arith.constant 0 : i32
    return %c0_i32, %c0_i32_0 : i32, i32
  }
  func.func @transform_2(%arg0: i32) -> (i32, i32) {
    %c0_i32 = arith.constant 0 : i32
    %c0_i32_0 = arith.constant 0 : i32
    return %arg0, %c0_i32 : i32, i32
  }
  func.func @transform_3(%arg0: i32) -> (i32, i32) {
    %c0_i32 = arith.constant 0 : i32
    %c0_i32_0 = arith.constant 0 : i32
    %c0_i32_1 = arith.constant 0 : i32
    return %c0_i32, %c0_i32_0 : i32, i32
  }
  func.func @transform_4(%arg0: i32) -> (i32, i32) {
    %c0_i32 = arith.constant 0 : i32
    %c0_i32_0 = arith.constant 0 : i32
    %c0_i32_1 = arith.constant 0 : i32
    return %c0_i32, %c0_i32_0 : i32, i32
  }
}

module attributes {stable_mosaic.version = 11 : i64} {
  func.func @_conv_stats_kernel(%arg0: i32, %arg1: memref<32x576xbf16, #tpu.memory_space<vmem>>, %arg2: memref<576x128xbf16, #tpu.memory_space<vmem>>, %arg3: memref<32x128xbf16, #tpu.memory_space<vmem>>, %arg4: memref<1x128xf32, #tpu.memory_space<vmem>>, %arg5: memref<1x128xf32, #tpu.memory_space<vmem>>) attributes {dimension_semantics = [#tpu.dimension_semantics<arbitrary>], iteration_bounds = array<i64: 1>, scalar_prefetch = 0 : i64, scratch_operands = 0 : i64, tpu.core_type = #tpu.core_type<tc>, window_params = [{transform_indices = @transform_0, window_bounds = array<i64: 32, 576>}, {pipeline_mode = #tpu.pipeline_mode<synchronous>, transform_indices = @transform_1, window_bounds = array<i64: 576, 128>}, {transform_indices = @transform_2, window_bounds = array<i64: 32, 128>}, {pipeline_mode = #tpu.pipeline_mode<synchronous>, transform_indices = @transform_3, window_bounds = array<i64: 1, 128>}, {pipeline_mode = #tpu.pipeline_mode<synchronous>, transform_indices = @transform_4, window_bounds = array<i64: 1, 128>}]} {
    %c0 = arith.constant 0 : index
    %c0_0 = arith.constant 0 : index
    %0 = vector.load %arg1[%c0, %c0_0] : memref<32x576xbf16, #tpu.memory_space<vmem>>, vector<32x576xbf16>
    %c0_1 = arith.constant 0 : index
    %c0_2 = arith.constant 0 : index
    %1 = vector.load %arg2[%c0_1, %c0_2] : memref<576x128xbf16, #tpu.memory_space<vmem>>, vector<576x128xbf16>
    %cst = arith.constant dense<0.000000e+00> : vector<32x128xf32>
    %2 = tpu.matmul %0, %1, %cst {dimension_numbers = #tpu.dot_dimension_numbers<[1], [0], [0], [1], [0, 0, 1, 1], [], []>} : vector<32x576xbf16>, vector<576x128xbf16>, vector<32x128xf32> -> vector<32x128xf32>
    %3 = arith.truncf %2 : vector<32x128xf32> to vector<32x128xbf16>
    %c0_3 = arith.constant 0 : index
    %c0_4 = arith.constant 0 : index
    %4 = vector.load %arg3[%c0_3, %c0_4] : memref<32x128xbf16, #tpu.memory_space<vmem>>, vector<32x128xbf16>
    tpu.vector_store %arg3[%c0_3, %c0_4], %3 {strides = array<i32>} : memref<32x128xbf16, #tpu.memory_space<vmem>>, vector<32x128xbf16>,
    %c0_i32 = arith.constant 0 : i32
    %5 = arith.cmpi eq, %arg0, %c0_i32 : i32
    %6 = arith.extui %5 : i1 to i32
    %c0_i32_5 = arith.constant 0 : i32
    %7 = arith.cmpi ne, %6, %c0_i32_5 : i32
    scf.if %7 {
      %cst_16 = arith.constant 0.000000e+00 : f32
      %19 = vector.broadcast %cst_16 : f32 to vector<1x128xf32>
      %c0_17 = arith.constant 0 : index
      %c0_18 = arith.constant 0 : index
      %20 = vector.load %arg4[%c0_17, %c0_18] : memref<1x128xf32, #tpu.memory_space<vmem>>, vector<1x128xf32>
      tpu.vector_store %arg4[%c0_17, %c0_18], %19 {strides = array<i32>} : memref<1x128xf32, #tpu.memory_space<vmem>>, vector<1x128xf32>,
      %cst_19 = arith.constant 0.000000e+00 : f32
      %21 = vector.broadcast %cst_19 : f32 to vector<1x128xf32>
      %c0_20 = arith.constant 0 : index
      %c0_21 = arith.constant 0 : index
      %22 = vector.load %arg5[%c0_20, %c0_21] : memref<1x128xf32, #tpu.memory_space<vmem>>, vector<1x128xf32>
      tpu.vector_store %arg5[%c0_20, %c0_21], %21 {strides = array<i32>} : memref<1x128xf32, #tpu.memory_space<vmem>>, vector<1x128xf32>,
    } else {
    }
    %c0_6 = arith.constant 0 : index
    %c0_7 = arith.constant 0 : index
    %8 = vector.load %arg4[%c0_6, %c0_7] : memref<1x128xf32, #tpu.memory_space<vmem>>, vector<1x128xf32>
    %cst_8 = arith.constant dense<0.000000e+00> : vector<128xf32>
    %9 = vector.multi_reduction <add>, %2, %cst_8 [0] : vector<32x128xf32> to vector<128xf32>
    %10 = vector.shape_cast %9 : vector<128xf32> to vector<1x128xf32>
    %11 = arith.addf %8, %10 : vector<1x128xf32>
    %c0_9 = arith.constant 0 : index
    %c0_10 = arith.constant 0 : index
    %12 = vector.load %arg4[%c0_9, %c0_10] : memref<1x128xf32, #tpu.memory_space<vmem>>, vector<1x128xf32>
    tpu.vector_store %arg4[%c0_9, %c0_10], %11 {strides = array<i32>} : memref<1x128xf32, #tpu.memory_space<vmem>>, vector<1x128xf32>,
    %c0_11 = arith.constant 0 : index
    %c0_12 = arith.constant 0 : index
    %13 = vector.load %arg5[%c0_11, %c0_12] : memref<1x128xf32, #tpu.memory_space<vmem>>, vector<1x128xf32>
    %14 = arith.mulf %2, %2 : vector<32x128xf32>
    %cst_13 = arith.constant dense<0.000000e+00> : vector<128xf32>
    %15 = vector.multi_reduction <add>, %14, %cst_13 [0] : vector<32x128xf32> to vector<128xf32>
    %16 = vector.shape_cast %15 : vector<128xf32> to vector<1x128xf32>
    %17 = arith.addf %13, %16 : vector<1x128xf32>
    %c0_14 = arith.constant 0 : index
    %c0_15 = arith.constant 0 : index
    %18 = vector.load %arg5[%c0_14, %c0_15] : memref<1x128xf32, #tpu.memory_space<vmem>>, vector<1x128xf32>
    tpu.vector_store %arg5[%c0_14, %c0_15], %17 {strides = array<i32>} : memref<1x128xf32, #tpu.memory_space<vmem>>, vector<1x128xf32>,
    return
  }
  func.func @transform_0(%arg0: i32) -> (i32, i32) {
    %c0_i32 = arith.constant 0 : i32
    %c0_i32_0 = arith.constant 0 : i32
    return %arg0, %c0_i32 : i32, i32
  }
  func.func @transform_1(%arg0: i32) -> (i32, i32) {
    %c0_i32 = arith.constant 0 : i32
    %c0_i32_0 = arith.constant 0 : i32
    %c0_i32_1 = arith.constant 0 : i32
    return %c0_i32, %c0_i32_0 : i32, i32
  }
  func.func @transform_2(%arg0: i32) -> (i32, i32) {
    %c0_i32 = arith.constant 0 : i32
    %c0_i32_0 = arith.constant 0 : i32
    return %arg0, %c0_i32 : i32, i32
  }
  func.func @transform_3(%arg0: i32) -> (i32, i32) {
    %c0_i32 = arith.constant 0 : i32
    %c0_i32_0 = arith.constant 0 : i32
    %c0_i32_1 = arith.constant 0 : i32
    return %c0_i32, %c0_i32_0 : i32, i32
  }
  func.func @transform_4(%arg0: i32) -> (i32, i32) {
    %c0_i32 = arith.constant 0 : i32
    %c0_i32_0 = arith.constant 0 : i32
    %c0_i32_1 = arith.constant 0 : i32
    return %c0_i32, %c0_i32_0 : i32, i32
  }
}

</mosaic_0001>

<llo_original>
// kernel: mul.4
$region0: #{mul.4}
  %s0 = inlined_call_operand.vmem [shape: f32[3,3,4,4], index: 0, kind: input, shape index: {}]
  %s1 = inlined_call_operand.vmem [shape: f32[36,4], index: 1, kind: output, shape index: {}]
  $region1: #{mul.4} parent=0
    #allocation0 [shape = 'u8[4096]{0}', space=vmem, size = 0x1000, scoped, tag = 'scoped mem for output reshape']
    #allocation1 [shape = 'u8[49152]{0}', space=vmem, size = 0xc000, scoped, tag = 'scoped mem for input reshape']
    %s3 = sshllo.u32 0, 4
    %s4 = smul.addr 4, 11
    %s5 = scalar_lea.vmem %s0, %s4
    %v6 = vld [vmem:[%s5] sm:%s3]
    %s7 = scalar_lea.vmem [#allocation1], 88
    %8 = vst [vmem:[%s7] sm:%s3] %v6
    %s9 = smul.addr 4, 10
    %s10 = scalar_lea.vmem %s0, %s9
    %v11 = vld [vmem:[%s10] sm:%s3]
    %s12 = scalar_lea.vmem [#allocation1], 80
    %13 = vst [vmem:[%s12] sm:%s3] %v11
    %s14 = smul.addr 4, 9
    %s15 = scalar_lea.vmem %s0, %s14
    %v16 = vld [vmem:[%s15] sm:%s3]
    %s17 = scalar_lea.vmem [#allocation1], 72
    %18 = vst [vmem:[%s17] sm:%s3] %v16
    %s19 = smul.addr 4, 8
    %s20 = scalar_lea.vmem %s0, %s19
    %v21 = vld [vmem:[%s20] sm:%s3]
    %s22 = scalar_lea.vmem [#allocation1], 64
    %23 = vst [vmem:[%s22] sm:%s3] %v21
    %s24 = smul.addr 4, 7
    %s25 = scalar_lea.vmem %s0, %s24
    %v26 = vld [vmem:[%s25] sm:%s3]
    %s27 = scalar_lea.vmem [#allocation1], 56
    %28 = vst [vmem:[%s27] sm:%s3] %v26
    %s29 = smul.addr 4, 6
    %s30 = scalar_lea.vmem %s0, %s29
    %v31 = vld [vmem:[%s30] sm:%s3]
    %s32 = scalar_lea.vmem [#allocation1], 48
    %33 = vst [vmem:[%s32] sm:%s3] %v31
    %s34 = smul.addr 4, 5
    %s35 = scalar_lea.vmem %s0, %s34
    %v36 = vld [vmem:[%s35] sm:%s3]
    %s37 = scalar_lea.vmem [#allocation1], 40
    %38 = vst [vmem:[%s37] sm:%s3] %v36
    %s39 = smul.addr 4, 4
    %s40 = scalar_lea.vmem %s0, %s39
    %v41 = vld [vmem:[%s40] sm:%s3]
    %s42 = scalar_lea.vmem [#allocation1], 32
    %43 = vst [vmem:[%s42] sm:%s3] %v41
    %s44 = smul.addr 4, 3
    %s45 = scalar_lea.vmem %s0, %s44
    %v46 = vld [vmem:[%s45] sm:%s3]
    %s47 = scalar_lea.vmem [#allocation1], 24
    %48 = vst [vmem:[%s47] sm:%s3] %v46
    %s49 = smul.addr 4, 2
    %s50 = scalar_lea.vmem %s0, %s49
    %v51 = vld [vmem:[%s50] sm:%s3]
    %s52 = scalar_lea.vmem [#allocation1], 16
    %53 = vst [vmem:[%s52] sm:%s3] %v51
    %s54 = scalar_lea.vmem %s0, 4
    %v55 = vld [vmem:[%s54] sm:%s3]
    %s56 = scalar_lea.vmem [#allocation1], 8
    %57 = vst [vmem:[%s56] sm:%s3] %v55
    %v58 = vld [vmem:[%s0] sm:%s3]
    %59 = vst [vmem:[#allocation1] sm:%s3] %v58
    %v60 = vld [vmem:[#allocation1] ss:$24 sm:$0xf]
    %vm61 = vcmask 31744
    %62 = vst.msk [vmem:[#allocation0] sm:$0xf] %vm61, %v60
    %s63 = scalar_lea.vmem [#allocation1], 18
    %v64 = vld [vmem:[%s63] ss:$24 sm:$0xf]
    %65 = vrot.lane.b32.xlu0 %v64, 32
    %v66 = vpop.permute.xlu0 %65
    %vm67 = vcmask 294144
    %68 = vst.msk [vmem:[#allocation0] sm:$0xf] %vm67, %v66
    %s69 = scalar_lea.vmem [#allocation1], 17
    %v70 = vld [vmem:[%s69] ss:$24 sm:$0xf]
    %71 = vrot.lane.b32.xlu0 %v70, 28
    %v72 = vpop.permute.xlu0 %71
    %vm73 = vcmask 261344
    %74 = vst.msk [vmem:[#allocation0] sm:$0xf] %vm73, %v72
    %s75 = scalar_lea.vmem [#allocation1], 16
    %v76 = vld [vmem:[%s75] ss:$24 sm:$0xf]
    %77 = vrot.lane.b32.xlu0 %v76, 24
    %v78 = vpop.permute.xlu0 %77
    %vm79 = vcmask 228544
    %80 = vst.msk [vmem:[#allocation0] sm:$0xf] %vm79, %v78
    %s81 = scalar_lea.vmem [#allocation1], 10
    %v82 = vld [vmem:[%s81] ss:$24 sm:$0xf]
    %83 = vrot.lane.b32.xlu0 %v82, 20
    %v84 = vpop.permute.xlu0 %83
    %vm85 = vcmask 195744
    %86 = vst.msk [vmem:[#allocation0] sm:$0xf] %vm85, %v84
    %s87 = scalar_lea.vmem [#allocation1], 9
    %v88 = vld [vmem:[%s87] ss:$24 sm:$0xf]
    %89 = vrot.lane.b32.xlu0 %v88, 16
    %v90 = vpop.permute.xlu0 %89
    %vm91 = vcmask 162944
    %92 = vst.msk [vmem:[#allocation0] sm:$0xf] %vm91, %v90
    %s93 = scalar_lea.vmem [#allocation1], 8
    %v94 = vld [vmem:[%s93] ss:$24 sm:$0xf]
    %95 = vrot.lane.b32.xlu0 %v94, 12
    %v96 = vpop.permute.xlu0 %95
    %vm97 = vcmask 130144
    %98 = vst.msk [vmem:[#allocation0] sm:$0xf] %vm97, %v96
    %s99 = scalar_lea.vmem [#allocation1], 2
    %v100 = vld [vmem:[%s99] ss:$24 sm:$0xf]
    %101 = vrot.lane.b32.xlu0 %v100, 8
    %v102 = vpop.permute.xlu0 %101
    %vm103 = vcmask 97344
    %104 = vst.msk [vmem:[#allocation0] sm:$0xf] %vm103, %v102
    %s105 = scalar_lea.vmem [#allocation1], 1
    %v106 = vld [vmem:[%s105] ss:$24 sm:$0xf]
    %107 = vrot.lane.b32.xlu0 %v106, 4
    %v108 = vpop.permute.xlu0 %107
    %vm109 = vcmask 64544
    %110 = vst.msk [vmem:[#allocation0] sm:$0xf] %vm109, %v108
    %s112 = sshllo.u32 0, 4
    %v114 = vld [vmem:[#allocation0] sm:%s112]
    %s115 = sshllo.u32 0, 4
    %116 = vst [vmem:[%s1] sm:%s115] %v114

// kernel: mul.18
$region0: #{mul.18}
  %s0 = inlined_call_operand.vmem [shape: f32[3,3,4,8], index: 0, kind: input, shape index: {}]
  %s1 = inlined_call_operand.vmem [shape: f32[36,8], index: 1, kind: output, shape index: {}]
  $region1: #{mul.18} parent=0
    #allocation0 [shape = 'u8[36864]{0}', space=vmem, size = 0x9000, scoped, tag = 'scoped mem for input reshape']
    %s3 = sshllo.u32 0, 4
    %s4 = smul.addr 4, 8
    %s5 = scalar_lea.vmem %s0, %s4
    %v6 = vld [vmem:[%s5] sm:%s3]
    %s7 = scalar_lea.vmem [#allocation0], 64
    %8 = vst [vmem:[%s7] sm:%s3] %v6
    %s9 = smul.addr 4, 7
    %s10 = scalar_lea.vmem %s0, %s9
    %v11 = vld [vmem:[%s10] sm:%s3]
    %s12 = scalar_lea.vmem [#allocation0], 56
    %13 = vst [vmem:[%s12] sm:%s3] %v11
    %s14 = smul.addr 4, 6
    %s15 = scalar_lea.vmem %s0, %s14
    %v16 = vld [vmem:[%s15] sm:%s3]
    %s17 = scalar_lea.vmem [#allocation0], 48
    %18 = vst [vmem:[%s17] sm:%s3] %v16
    %s19 = smul.addr 4, 5
    %s20 = scalar_lea.vmem %s0, %s19
    %v21 = vld [vmem:[%s20] sm:%s3]
    %s22 = scalar_lea.vmem [#allocation0], 40
    %23 = vst [vmem:[%s22] sm:%s3] %v21
    %s24 = smul.addr 4, 4
    %s25 = scalar_lea.vmem %s0, %s24
    %v26 = vld [vmem:[%s25] sm:%s3]
    %s27 = scalar_lea.vmem [#allocation0], 32
    %28 = vst [vmem:[%s27] sm:%s3] %v26
    %s29 = smul.addr 4, 3
    %s30 = scalar_lea.vmem %s0, %s29
    %v31 = vld [vmem:[%s30] sm:%s3]
    %s32 = scalar_lea.vmem [#allocation0], 24
    %33 = vst [vmem:[%s32] sm:%s3] %v31
    %s34 = smul.addr 4, 2
    %s35 = scalar_lea.vmem %s0, %s34
    %v36 = vld [vmem:[%s35] sm:%s3]
    %s37 = scalar_lea.vmem [#allocation0], 16
    %38 = vst [vmem:[%s37] sm:%s3] %v36
    %s39 = scalar_lea.vmem %s0, 4
    %v40 = vld [vmem:[%s39] sm:%s3]
    %s41 = scalar_lea.vmem [#allocation0], 8
    %42 = vst [vmem:[%s41] sm:%s3] %v40
    %v43 = vld [vmem:[%s0] sm:%s3]
    %44 = vst [vmem:[#allocation0] sm:%s3] %v43
    %v45 = vld [vmem:[#allocation0] sm:$0xf]
    %vm46 = vcmask 64512
    %47 = vst.msk [vmem:[%s1] sm:$0xf] %vm46, %v45
    %s48 = scalar_lea.vmem [#allocation0], 8
    %v49 = vld [vmem:[%s48] sm:$0xf]
    %vm50 = vcmask 64512
    %s51 = scalar_lea.vmem %s1, 4
    %52 = vst.msk [vmem:[%s51] sm:$0xf] %vm50, %v49
    %s53 = scalar_lea.vmem [#allocation0], 16
    %v54 = vld [vmem:[%s53] sm:$0xf]
    %vm55 = vcmask 64512
    %s56 = scalar_lea.vmem %s1, 8
    %57 = vst.msk [vmem:[%s56] sm:$0xf] %vm55, %v54
    %s58 = scalar_lea.vmem [#allocation0], 24
    %v59 = vld [vmem:[%s58] sm:$0xf]
    %vm60 = vcmask 64512
    %s61 = scalar_lea.vmem %s1, 12
    %62 = vst.msk [vmem:[%s61] sm:$0xf] %vm60, %v59
    %s63 = scalar_lea.vmem [#allocation0], 32
    %v64 = vld [vmem:[%s63] sm:$0xf]
    %vm65 = vcmask 64512
    %s66 = scalar_lea.vmem %s1, 16
    %67 = vst.msk [vmem:[%s66] sm:$0xf] %vm65, %v64
    %s68 = scalar_lea.vmem [#allocation0], 40
    %v69 = vld [vmem:[%s68] sm:$0xf]
    %vm70 = vcmask 64512
    %s71 = scalar_lea.vmem %s1, 20
    %72 = vst.msk [vmem:[%s71] sm:$0xf] %vm70, %v69
    %s73 = scalar_lea.vmem [#allocation0], 48
    %v74 = vld [vmem:[%s73] sm:$0xf]
    %vm75 = vcmask 64512
    %s76 = scalar_lea.vmem %s1, 24
    %77 = vst.msk [vmem:[%s76] sm:$0xf] %vm75, %v74
    %s78 = scalar_lea.vmem [#allocation0], 56
    %v79 = vld [vmem:[%s78] sm:$0xf]
    %vm80 = vcmask 64512
    %s81 = scalar_lea.vmem %s1, 28
    %82 = vst.msk [vmem:[%s81] sm:$0xf] %vm80, %v79
    %s83 = scalar_lea.vmem [#allocation0], 64
    %v84 = vld [vmem:[%s83] sm:$0xf]
    %vm85 = vcmask 64512
    %s86 = scalar_lea.vmem %s1, 32
    %87 = vst.msk [vmem:[%s86] sm:$0xf] %vm85, %v84

// kernel: decoder_block_forward.2
$region0: #{decoder_block_forward.2}
  #allocation0 [shape = 'u32[]', space=smem, size = 0x4, offset = 0x4, fixed_abs, tag = 'smem constant byte address 0x4 - core index']
  #allocation1 [shape = 'u32[144,128]{1,0:T(1,128)}', space=vmem, size = 0x12000, scoped, tag = 'internal scratch']
  %s0 = inlined_call_operand.vmem [shape: bf16[32,576], index: 0, kind: input, shape index: {}]
  %s1 = inlined_call_operand.vmem [shape: bf16[576,64], index: 1, kind: input, shape index: {}]
  %s2 = inlined_call_operand.vmem [shape: bf16[32,64], index: 2, kind: output, shape index: {0}]
  %s3 = inlined_call_operand.vmem [shape: f32[1,64], index: 3, kind: output, shape index: {1}]
  %s4 = inlined_call_operand.vmem [shape: f32[1,64], index: 4, kind: output, shape index: {2}]
  %5 = xla_tuple %s2, %s3, %s4
  %s6 = sld [smem:[#allocation0]]
  $region38: #{decoder_block_forward.2} parent=0
    _
  %s8 = ssub.s32 1, %s6
  %s9 = scalar_select 0, %s8, %s6
  // Predicated region
  $region2: #{decoder_block_forward.2} parent=0 // pred_check
    _
  $region3: #{decoder_block_forward.2} parent=0 // pred_check_branch
    %11 = sbr.rel (0) target = $region5
  $region4: #{decoder_block_forward.2} parent=0 // pred_region
    _
  $region5: #{decoder_block_forward.2} parent=0 // pred_fallthru
    _
  // Predicated region
  $region6: #{decoder_block_forward.2} parent=0 // pred_check
    _
  $region7: #{decoder_block_forward.2} parent=0 // pred_check_branch
    %13 = sbr.rel (0) target = $region9
  $region8: #{decoder_block_forward.2} parent=0 // pred_region
    _
  $region9: #{decoder_block_forward.2} parent=0 // pred_fallthru
    _
  %v15 = vld [vmem:[%s0] sm:$0xff]
  %v16 = vld [vmem:[%s0 + $0x8] sm:$0xff]
  %v17 = vld [vmem:[%s0 + $0x10] sm:$0xf]
  %v18 = vld [vmem:[%s0 + $0x14] sm:$0xff]
  %v19 = vld [vmem:[%s0 + $0x1c] sm:$0xff]
  %v20 = vld [vmem:[%s0 + $0x24] sm:$0xf]
  %v21 = vld [vmem:[%s0 + $0x28] sm:$0xff]
  %v22 = vld [vmem:[%s0 + $0x30] sm:$0xff]
  %v23 = vld [vmem:[%s0 + $0x38] sm:$0xf]
  %v24 = vld [vmem:[%s0 + $0x3c] sm:$0xff]
  %v25 = vld [vmem:[%s0 + $0x44] sm:$0xff]
  %v26 = vld [vmem:[%s0 + $0x4c] sm:$0xf]
  %v27 = vld [vmem:[%s1] sm:$0xf]
  %v28 = vld [vmem:[%s1 + $0x4] sm:$0xf]
  %v29 = vld [vmem:[%s1 + $0x8] sm:$0xf]
  %v30 = vld [vmem:[%s1 + $0xc] sm:$0xf]
  %v31 = vld [vmem:[%s1 + $0x10] sm:$0xf]
  %v32 = vld [vmem:[%s1 + $0x14] sm:$0xf]
  %v33 = vld [vmem:[%s1 + $0x18] sm:$0xf]
  %v34 = vld [vmem:[%s1 + $0x1c] sm:$0xf]
  %v35 = vld [vmem:[%s1 + $0x20] sm:$0xf]
  %v36 = vld [vmem:[%s1 + $0x24] sm:$0xf]
  %v37 = vld [vmem:[%s1 + $0x28] sm:$0xf]
  %v38 = vld [vmem:[%s1 + $0x2c] sm:$0xf]
  %v39 = vld [vmem:[%s1 + $0x30] sm:$0xf]
  %v40 = vld [vmem:[%s1 + $0x34] sm:$0xf]
  %v41 = vld [vmem:[%s1 + $0x38] sm:$0xf]
  %v42 = vld [vmem:[%s1 + $0x3c] sm:$0xf]
  %v43 = vld [vmem:[%s1 + $0x40] sm:$0xf]
  %v44 = vld [vmem:[%s1 + $0x44] sm:$0xf]
  %v45 = vld [vmem:[%s1 + $0x48] sm:$0xf]
  %v46 = vld [vmem:[%s1 + $0x4c] sm:$0xf]
  %v47 = vld [vmem:[%s1 + $0x50] sm:$0xf]
  %v48 = vld [vmem:[%s1 + $0x54] sm:$0xf]
  %v49 = vld [vmem:[%s1 + $0x58] sm:$0xf]
  %v50 = vld [vmem:[%s1 + $0x5c] sm:$0xf]
  %v51 = vld [vmem:[%s1 + $0x60] sm:$0xf]
  %v52 = vld [vmem:[%s1 + $0x64] sm:$0xf]
  %v53 = vld [vmem:[%s1 + $0x68] sm:$0xf]
  %v54 = vld [vmem:[%s1 + $0x6c] sm:$0xf]
  %v55 = vld [vmem:[%s1 + $0x70] sm:$0xf]
  %v56 = vld [vmem:[%s1 + $0x74] sm:$0xf]
  %v57 = vld [vmem:[%s1 + $0x78] sm:$0xf]
  %v58 = vld [vmem:[%s1 + $0x7c] sm:$0xf]
  %v59 = vld [vmem:[%s1 + $0x80] sm:$0xf]
  %v60 = vld [vmem:[%s1 + $0x84] sm:$0xf]
  %v61 = vld [vmem:[%s1 + $0x88] sm:$0xf]
  %v62 = vld [vmem:[%s1 + $0x8c] sm:$0xf]
  %v63 = vld [vmem:[%s1 + $0x90] sm:$0xf]
  %v64 = vld [vmem:[%s1 + $0x94] sm:$0xf]
  %v65 = vld [vmem:[%s1 + $0x98] sm:$0xf]
  %v66 = vld [vmem:[%s1 + $0x9c] sm:$0xf]
  %v67 = vld [vmem:[%s1 + $0xa0] sm:$0xf]
  %v68 = vld [vmem:[%s1 + $0xa4] sm:$0xf]
  %v69 = vld [vmem:[%s1 + $0xa8] sm:$0xf]
  %v70 = vld [vmem:[%s1 + $0xac] sm:$0xf]
  %v71 = vld [vmem:[%s1 + $0xb0] sm:$0xf]
  %v72 = vld [vmem:[%s1 + $0xb4] sm:$0xf]
  %v73 = vld [vmem:[%s1 + $0xb8] sm:$0xf]
  %v74 = vld [vmem:[%s1 + $0xbc] sm:$0xf]
  %v75 = vld [vmem:[%s1 + $0xc0] sm:$0xf]
  %v76 = vld [vmem:[%s1 + $0xc4] sm:$0xf]
  %v77 = vld [vmem:[%s1 + $0xc8] sm:$0xf]
  %v78 = vld [vmem:[%s1 + $0xcc] sm:$0xf]
  %v79 = vld [vmem:[%s1 + $0xd0] sm:$0xf]
  %v80 = vld [vmem:[%s1 + $0xd4] sm:$0xf]
  %v81 = vld [vmem:[%s1 + $0xd8] sm:$0xf]
  %v82 = vld [vmem:[%s1 + $0xdc] sm:$0xf]
  %v83 = vld [vmem:[%s1 + $0xe0] sm:$0xf]
  %v84 = vld [vmem:[%s1 + $0xe4] sm:$0xf]
  %v85 = vld [vmem:[%s1 + $0xe8] sm:$0xf]
  %v86 = vld [vmem:[%s1 + $0xec] sm:$0xf]
  %v87 = vld [vmem:[%s1 + $0xf0] sm:$0xf]
  %v88 = vld [vmem:[%s1 + $0xf4] sm:$0xf]
  %v89 = vld [vmem:[%s1 + $0xf8] sm:$0xf]
  %v90 = vld [vmem:[%s1 + $0xfc] sm:$0xf]
  %v91 = vld [vmem:[%s1 + $0x100] sm:$0xf]
  %v92 = vld [vmem:[%s1 + $0x104] sm:$0xf]
  %v93 = vld [vmem:[%s1 + $0x108] sm:$0xf]
  %v94 = vld [vmem:[%s1 + $0x10c] sm:$0xf]
  %v95 = vld [vmem:[%s1 + $0x110] sm:$0xf]
  %v96 = vld [vmem:[%s1 + $0x114] sm:$0xf]
  %v97 = vld [vmem:[%s1 + $0x118] sm:$0xf]
  %v98 = vld [vmem:[%s1 + $0x11c] sm:$0xf]
  %v111 = vunpack.c.l.b16 %v15
  %v112 = vunpack.c.h.b16 %v15
  %v113 = vunpack.c.l.b16 %v16
  %v114 = vunpack.c.h.b16 %v16
  %v115 = vunpack.c.l.b16 %v17
  %v116 = vunpack.c.l.b16 %v18
  %v117 = vunpack.c.h.b16 %v18
  %v118 = vunpack.c.l.b16 %v19
  %v119 = vunpack.c.h.b16 %v19
  %v120 = vunpack.c.l.b16 %v20
  %v121 = vunpack.c.l.b16 %v21
  %v122 = vunpack.c.h.b16 %v21
  %v123 = vunpack.c.l.b16 %v22
  %v124 = vunpack.c.h.b16 %v22
  %v125 = vunpack.c.l.b16 %v23
  %v126 = vunpack.c.l.b16 %v24
  %v127 = vunpack.c.h.b16 %v24
  %v128 = vunpack.c.l.b16 %v25
  %v129 = vunpack.c.h.b16 %v25
  %v130 = vunpack.c.l.b16 %v26
  %v131 = vpack.c.b16 %v116, %v111
  %v132 = vpack.c.b16 %v117, %v112
  %v133 = vpack.c.b16 %v118, %v113
  %v134 = vpack.c.b16 %v119, %v114
  %v135 = vpack.c.b16 %v120, %v115
  %v136 = vpack.c.b16 %v126, %v121
  %v137 = vpack.c.b16 %v127, %v122
  %v138 = vpack.c.b16 %v128, %v123
  %v139 = vpack.c.b16 %v129, %v124
  %v140 = vpack.c.b16 %v130, %v125
  %v221 = vunpack.c.l.b16 %v27
  %v222 = vunpack.c.l.b16 %v28
  %v223 = vunpack.c.l.b16 %v29
  %v224 = vunpack.c.l.b16 %v30
  %v225 = vunpack.c.l.b16 %v31
  %v226 = vunpack.c.l.b16 %v32
  %v227 = vunpack.c.l.b16 %v33
  %v228 = vunpack.c.l.b16 %v34
  %v229 = vunpack.c.l.b16 %v35
  %v230 = vunpack.c.l.b16 %v36
  %v231 = vunpack.c.l.b16 %v37
  %v232 = vunpack.c.l.b16 %v38
  %v233 = vunpack.c.l.b16 %v39
  %v234 = vunpack.c.l.b16 %v40
  %v235 = vunpack.c.l.b16 %v41
  %v236 = vunpack.c.l.b16 %v42
  %v237 = vunpack.c.l.b16 %v43
  %v238 = vunpack.c.l.b16 %v44
  %v239 = vunpack.c.l.b16 %v45
  %v240 = vunpack.c.l.b16 %v46
  %v241 = vunpack.c.l.b16 %v47
  %v242 = vunpack.c.l.b16 %v48
  %v243 = vunpack.c.l.b16 %v49
  %v244 = vunpack.c.l.b16 %v50
  %v245 = vunpack.c.l.b16 %v51
  %v246 = vunpack.c.l.b16 %v52
  %v247 = vunpack.c.l.b16 %v53
  %v248 = vunpack.c.l.b16 %v54
  %v249 = vunpack.c.l.b16 %v55
  %v250 = vunpack.c.l.b16 %v56
  %v251 = vunpack.c.l.b16 %v57
  %v252 = vunpack.c.l.b16 %v58
  %v253 = vunpack.c.l.b16 %v59
  %v254 = vunpack.c.l.b16 %v60
  %v255 = vunpack.c.l.b16 %v61
  %v256 = vunpack.c.l.b16 %v62
  %v257 = vunpack.c.l.b16 %v63
  %v258 = vunpack.c.l.b16 %v64
  %v259 = vunpack.c.l.b16 %v65
  %v260 = vunpack.c.l.b16 %v66
  %v261 = vunpack.c.l.b16 %v67
  %v262 = vunpack.c.l.b16 %v68
  %v263 = vunpack.c.l.b16 %v69
  %v264 = vunpack.c.l.b16 %v70
  %v265 = vunpack.c.l.b16 %v71
  %v266 = vunpack.c.l.b16 %v72
  %v267 = vunpack.c.l.b16 %v73
  %v268 = vunpack.c.l.b16 %v74
  %v269 = vunpack.c.l.b16 %v75
  %v270 = vunpack.c.l.b16 %v76
  %v271 = vunpack.c.l.b16 %v77
  %v272 = vunpack.c.l.b16 %v78
  %v273 = vunpack.c.l.b16 %v79
  %v274 = vunpack.c.l.b16 %v80
  %v275 = vunpack.c.l.b16 %v81
  %v276 = vunpack.c.l.b16 %v82
  %v277 = vunpack.c.l.b16 %v83
  %v278 = vunpack.c.l.b16 %v84
  %v279 = vunpack.c.l.b16 %v85
  %v280 = vunpack.c.l.b16 %v86
  %v281 = vunpack.c.l.b16 %v87
  %v282 = vunpack.c.l.b16 %v88
  %v283 = vunpack.c.l.b16 %v89
  %v284 = vunpack.c.l.b16 %v90
  %v285 = vunpack.c.l.b16 %v91
  %v286 = vunpack.c.l.b16 %v92
  %v287 = vunpack.c.l.b16 %v93
  %v288 = vunpack.c.l.b16 %v94
  %v289 = vunpack.c.l.b16 %v95
  %v290 = vunpack.c.l.b16 %v96
  %v291 = vunpack.c.l.b16 %v97
  %v292 = vunpack.c.l.b16 %v98
  %v293 = vpack.c.b16 %v222, %v221
  %v294 = vpack.c.b16 %v224, %v223
  %v295 = vpack.c.b16 %v226, %v225
  %v296 = vpack.c.b16 %v228, %v227
  %v297 = vpack.c.b16 %v230, %v229
  %v298 = vpack.c.b16 %v232, %v231
  %v299 = vpack.c.b16 %v234, %v233
  %v300 = vpack.c.b16 %v236, %v235
  %v301 = vpack.c.b16 %v238, %v237
  %v302 = vpack.c.b16 %v240, %v239
  %v303 = vpack.c.b16 %v242, %v241
  %v304 = vpack.c.b16 %v244, %v243
  %v305 = vpack.c.b16 %v246, %v245
  %v306 = vpack.c.b16 %v248, %v247
  %v307 = vpack.c.b16 %v250, %v249
  %v308 = vpack.c.b16 %v252, %v251
  %v309 = vpack.c.b16 %v254, %v253
  %v310 = vpack.c.b16 %v256, %v255
  %v311 = vpack.c.b16 %v258, %v257
  %v312 = vpack.c.b16 %v260, %v259
  %v313 = vpack.c.b16 %v262, %v261
  %v314 = vpack.c.b16 %v264, %v263
  %v315 = vpack.c.b16 %v266, %v265
  %v316 = vpack.c.b16 %v268, %v267
  %v317 = vpack.c.b16 %v270, %v269
  %v318 = vpack.c.b16 %v272, %v271
  %v319 = vpack.c.b16 %v274, %v273
  %v320 = vpack.c.b16 %v276, %v275
  %v321 = vpack.c.b16 %v278, %v277
  %v322 = vpack.c.b16 %v280, %v279
  %v323 = vpack.c.b16 %v282, %v281
  %v324 = vpack.c.b16 %v284, %v283
  %v325 = vpack.c.b16 %v286, %v285
  %v326 = vpack.c.b16 %v288, %v287
  %v327 = vpack.c.b16 %v290, %v289
  %v328 = vpack.c.b16 %v292, %v291
  %vm365 = vcmask 523264
  %v367 = vsel %vm365, %v135, 0
  %v370 = vsel %vm365, %v140, 0
  %372 = vmatprep.subr.bf16.mxu0 0
  %373 = vmatpush1.bf16.msra.mxu0 %v293
  %374 = vmatprep.subr.bf16.mxu0 0
  %375 = vmatpush1.bf16.msra.mxu0 %v294
  %376 = vmatprep.subr.bf16.mxu0 0
  %377 = vmatpush1.bf16.msra.mxu0 %v295
  %378 = vmatprep.subr.bf16.mxu0 0
  %379 = vmatpush1.bf16.msra.mxu0 %v296
  %380 = vmatprep.subr.bf16.mxu0 0
  %381 = vmatpush1.bf16.msra.mxu0 %v297
  %382 = vmatprep.subr.bf16.mxu0 0
  %383 = vmatpush1.bf16.msra.mxu0 %v298
  %384 = vmatprep.subr.bf16.mxu0 0
  %385 = vmatpush1.bf16.msra.mxu0 %v299
  %386 = vmatprep.subr.bf16.mxu0 0
  %387 = vmatpush1.bf16.msra.mxu0 %v300
  %388 = vmatprep.subr.bf16.mxu0 0
  %389 = vmatpush1.bf16.msra.mxu0 %v301
  %390 = vmatprep.subr.bf16.mxu0 0
  %391 = vmatpush1.bf16.msra.mxu0 %v302
  %392 = vmatprep.subr.bf16.mxu0 0
  %393 = vmatpush1.bf16.msra.mxu0 %v303
  %394 = vmatprep.subr.bf16.mxu0 0
  %395 = vmatpush1.bf16.msra.mxu0 %v304
  %396 = vmatprep.subr.bf16.mxu0 0
  %397 = vmatpush1.bf16.msra.mxu0 %v305
  %398 = vmatprep.subr.bf16.mxu0 0
  %399 = vmatpush1.bf16.msra.mxu0 %v306
  %400 = vmatprep.subr.bf16.mxu0 0
  %401 = vmatpush1.bf16.msra.mxu0 %v307
  %402 = vmatprep.subr.bf16.mxu0 0
  %403 = vmatpush1.bf16.msra.mxu0 %v308
  %404 = vmatprep.mubr.bf16.mxu0 %v132
  %405 = vmatmul.mubr.bf16.gmra.mrb[0].mxu0 %v131
  %v406 = vpop.f32.mrb[0].mxu0
  %v407 = vadd.f32 0.0, %v406
  %v408 = vpop.f32.mrb[0].mxu0
  %v409 = vpop.f32.mrb[0].mxu0
  %v410 = vadd.f32 0.0, %v409
  %v411 = vpop.f32.mrb[0].mxu0
  %412 = vmatprep.mubr.bf16.mxu0 %v137
  %413 = vmatmul.mubr.bf16.gmra.mrb[0].mxu0 %v136
  %v414 = vpop.f32.mrb[0].mxu0
  %v415 = vadd.f32 0.0, %v414
  %v416 = vpop.f32.mrb[0].mxu0
  %v417 = vpop.f32.mrb[0].mxu0
  %v418 = vadd.f32 0.0, %v417
  %v419 = vpop.f32.mrb[0].mxu0
  %420 = vdwg.mxu0
  %421 = vmatprep.subr.bf16.mxu0 0
  %422 = vmatpush1.bf16.msra.mxu0 %v309
  %423 = vmatprep.subr.bf16.mxu0 0
  %424 = vmatpush1.bf16.msra.mxu0 %v310
  %425 = vmatprep.subr.bf16.mxu0 0
  %426 = vmatpush1.bf16.msra.mxu0 %v311
  %427 = vmatprep.subr.bf16.mxu0 0
  %428 = vmatpush1.bf16.msra.mxu0 %v312
  %429 = vmatprep.subr.bf16.mxu0 0
  %430 = vmatpush1.bf16.msra.mxu0 %v313
  %431 = vmatprep.subr.bf16.mxu0 0
  %432 = vmatpush1.bf16.msra.mxu0 %v314
  %433 = vmatprep.subr.bf16.mxu0 0
  %434 = vmatpush1.bf16.msra.mxu0 %v315
  %435 = vmatprep.subr.bf16.mxu0 0
  %436 = vmatpush1.bf16.msra.mxu0 %v316
  %437 = vmatprep.subr.bf16.mxu0 0
  %438 = vmatpush1.bf16.msra.mxu0 %v317
  %439 = vmatprep.subr.bf16.mxu0 0
  %440 = vmatpush1.bf16.msra.mxu0 %v318
  %441 = vmatprep.subr.bf16.mxu0 0
  %442 = vmatpush1.bf16.msra.mxu0 %v319
  %443 = vmatprep.subr.bf16.mxu0 0
  %444 = vmatpush1.bf16.msra.mxu0 %v320
  %445 = vmatprep.subr.bf16.mxu0 0
  %446 = vmatpush1.bf16.msra.mxu0 %v321
  %447 = vmatprep.subr.bf16.mxu0 0
  %448 = vmatpush1.bf16.msra.mxu0 %v322
  %449 = vmatprep.subr.bf16.mxu0 0
  %450 = vmatpush1.bf16.msra.mxu0 %v323
  %451 = vmatprep.subr.bf16.mxu0 0
  %452 = vmatpush1.bf16.msra.mxu0 %v324
  %453 = vmatprep.mubr.bf16.mxu0 %v134
  %454 = vmatmul.mubr.bf16.gmra.mrb[0].mxu0 %v133
  %v455 = vpop.f32.mrb[0].mxu0
  %v456 = vadd.f32 %v407, %v455
  %v457 = vpop.f32.mrb[0].mxu0
  %v458 = vpop.f32.mrb[0].mxu0
  %v459 = vadd.f32 %v410, %v458
  %v460 = vpop.f32.mrb[0].mxu0
  %461 = vmatprep.mubr.bf16.mxu0 %v139
  %462 = vmatmul.mubr.bf16.gmra.mrb[0].mxu0 %v138
  %v463 = vpop.f32.mrb[0].mxu0
  %v464 = vadd.f32 %v415, %v463
  %v465 = vpop.f32.mrb[0].mxu0
  %v466 = vpop.f32.mrb[0].mxu0
  %v467 = vadd.f32 %v418, %v466
  %v468 = vpop.f32.mrb[0].mxu0
  %469 = vdwg.mxu0
  %470 = vmatprep.subr.bf16.mxu0 0
  %471 = vmatpush1.bf16.msra.mxu0 %v325
  %472 = vmatprep.subr.bf16.mxu0 0
  %473 = vmatpush1.bf16.msra.mxu0 %v326
  %474 = vmatprep.subr.bf16.mxu0 0
  %475 = vmatpush1.bf16.msra.mxu0 %v327
  %476 = vmatprep.subr.bf16.mxu0 0
  %477 = vmatpush1.bf16.msra.mxu0 %v328
  %478 = vmatprep.subr.bf16.mxu0 0
  %479 = vmatpush1.bf16.msra.mxu0 0
  %480 = vmatprep.subr.bf16.mxu0 0
  %481 = vmatpush1.bf16.msra.mxu0 0
  %482 = vmatprep.subr.bf16.mxu0 0
  %483 = vmatpush1.bf16.msra.mxu0 0
  %484 = vmatprep.subr.bf16.mxu0 0
  %485 = vmatpush1.bf16.msra.mxu0 0
  %486 = vmatprep.subr.bf16.mxu0 0
  %487 = vmatpush1.bf16.msra.mxu0 0
  %488 = vmatprep.subr.bf16.mxu0 0
  %489 = vmatpush1.bf16.msra.mxu0 0
  %490 = vmatprep.subr.bf16.mxu0 0
  %491 = vmatpush1.bf16.msra.mxu0 0
  %492 = vmatprep.subr.bf16.mxu0 0
  %493 = vmatpush1.bf16.msra.mxu0 0
  %494 = vmatprep.subr.bf16.mxu0 0
  %495 = vmatpush1.bf16.msra.mxu0 0
  %496 = vmatprep.subr.bf16.mxu0 0
  %497 = vmatpush1.bf16.msra.mxu0 0
  %498 = vmatprep.subr.bf16.mxu0 0
  %499 = vmatpush1.bf16.msra.mxu0 0
  %500 = vmatprep.subr.bf16.mxu0 0
  %501 = vmatpush1.bf16.msra.mxu0 0
  %502 = vmatprep.mubr.bf16.mxu0 0
  %503 = vmatmul.mubr.bf16.gmra.mrb[0].mxu0 %v367
  %v504 = vpop.f32.mrb[0].mxu0
  %v505 = vadd.f32 %v456, %v504
  %v506 = vpop.f32.mrb[0].mxu0
  %v507 = vpop.f32.mrb[0].mxu0
  %v508 = vadd.f32 %v459, %v507
  %v509 = vpop.f32.mrb[0].mxu0
  %510 = vmatprep.mubr.bf16.mxu0 0
  %511 = vmatmul.mubr.bf16.gmra.mrb[0].mxu0 %v370
  %v512 = vpop.f32.mrb[0].mxu0
  %v513 = vadd.f32 %v464, %v512
  %v514 = vpop.f32.mrb[0].mxu0
  %v515 = vpop.f32.mrb[0].mxu0
  %v516 = vadd.f32 %v467, %v515
  %v517 = vpop.f32.mrb[0].mxu0
  %518 = vdwg.mxu0
  %v519 = vpack.c.bf16 %v508, %v505
  %v520 = vpack.c.bf16 %v516, %v513
  %v523 = vunpack.c.l.b16 %v519
  %v524 = vunpack.c.h.b16 %v519
  %v525 = vunpack.c.l.b16 %v520
  %v526 = vunpack.c.h.b16 %v520
  %v527 = vpack.c.b16 %v523, %v523
  %v528 = vpack.c.b16 %v524, %v524
  %v529 = vpack.c.b16 %v525, %v525
  %v530 = vpack.c.b16 %v526, %v526
  %vm535 = vcmask 519168
  %536 = vst.msk [vmem:[%s2] sm:$0xf] %vm535, %v527
  %537 = vst.msk [vmem:[%s2 + $0x4] sm:$0xf] %vm535, %v528
  %538 = vst.msk [vmem:[%s2 + $0x8] sm:$0xf] %vm535, %v529
  %539 = vst.msk [vmem:[%s2 + $0xc] sm:$0xf] %vm535, %v530
  %p540 = scmp.eq.s32.totalorder 0, 0
  // Predicated region
  $region10: #{decoder_block_forward.2} parent=0 // pred_check
    %p541 = pneg %p540
  $region11: #{decoder_block_forward.2} parent=0 // pred_check_branch
    %543 = sbr.rel (%p541) target = $region13
  $region12: #{decoder_block_forward.2} parent=0 // pred_region
    %vm544 = vcmask 516096
    %545 = vst.msk [vmem:[%s3] sm:$0x1] %vm544, 0.0
    %546 = vst.msk [vmem:[%s4] sm:$0x1] %vm544, 0.0
  $region13: #{decoder_block_forward.2} parent=0 // pred_fallthru
    _
  %v547 = vld [vmem:[%s3] sm:$0x1]
  %v548 = vsel %vm365, %v505, 0.0
  %v549 = vsel %vm365, %v508, 0.0
  %v550 = vadd.f32 %v548, %v549
  %v551 = vsel %vm365, %v513, 0.0
  %v552 = vadd.f32 %v550, %v551
  %v553 = vsel %vm365, %v516, 0.0
  %v554 = vadd.f32 %v552, %v553
  %v555 = vrot.slane %v554, 4
  %v556 = vadd.f32 %v554, %v555
  %v557 = vrot.slane %v556, 2
  %v558 = vadd.f32 %v556, %v557
  %v559 = vrot.slane %v558, 1
  %v560 = vadd.f32 %v558, %v559
  %v561 = vadd.f32 %v547, %v560
  %vm562 = vcmask 516096
  %563 = vst.msk [vmem:[%s3] sm:$0x1] %vm562, %v561
  %v564 = vld [vmem:[%s4] sm:$0x1]
  %v565 = vmul.f32 %v505, %v505
  %v566 = vmul.f32 %v508, %v508
  %v567 = vmul.f32 %v513, %v513
  %v568 = vmul.f32 %v516, %v516
  %v569 = vsel %vm365, %v565, 0.0
  %v570 = vsel %vm365, %v566, 0.0
  %v571 = vadd.f32 %v569, %v570
  %v572 = vsel %vm365, %v567, 0.0
  %v573 = vadd.f32 %v571, %v572
  %v574 = vsel %vm365, %v568, 0.0
  %v575 = vadd.f32 %v573, %v574
  %v576 = vrot.slane %v575, 4
  %v577 = vadd.f32 %v575, %v576
  %v578 = vrot.slane %v577, 2
  %v579 = vadd.f32 %v577, %v578
  %v580 = vrot.slane %v579, 1
  %v581 = vadd.f32 %v579, %v580
  %v582 = vadd.f32 %v564, %v581
  %583 = vst.msk [vmem:[%s4] sm:$0x1] %vm562, %v582
  // Predicated region
  $region14: #{decoder_block_forward.2} parent=0 // pred_check
    _
  $region15: #{decoder_block_forward.2} parent=0 // pred_check_branch
    %585 = sbr.rel (0) target = $region17
  $region16: #{decoder_block_forward.2} parent=0 // pred_region
    _
  $region17: #{decoder_block_forward.2} parent=0 // pred_fallthru
    _
  // Predicated region
  $region18: #{decoder_block_forward.2} parent=0 // pred_check
    _
  $region19: #{decoder_block_forward.2} parent=0 // pred_check_branch
    %587 = sbr.rel (0) target = $region21
  $region20: #{decoder_block_forward.2} parent=0 // pred_region
    _
  $region21: #{decoder_block_forward.2} parent=0 // pred_fallthru
    _
  // Predicated region
  $region22: #{decoder_block_forward.2} parent=0 // pred_check
    _
  $region23: #{decoder_block_forward.2} parent=0 // pred_check_branch
    %589 = sbr.rel (0) target = $region25
  $region24: #{decoder_block_forward.2} parent=0 // pred_region
    _
  $region25: #{decoder_block_forward.2} parent=0 // pred_fallthru
    _
  // Predicated region
  $region26: #{decoder_block_forward.2} parent=0 // pred_check
    _
  $region27: #{decoder_block_forward.2} parent=0 // pred_check_branch
    %591 = sbr.rel (0) target = $region29
  $region28: #{decoder_block_forward.2} parent=0 // pred_region
    _
  $region29: #{decoder_block_forward.2} parent=0 // pred_fallthru
    _
  // Predicated region
  $region30: #{decoder_block_forward.2} parent=0 // pred_check
    _
  $region31: #{decoder_block_forward.2} parent=0 // pred_check_branch
    %593 = sbr.rel (0) target = $region33
  $region32: #{decoder_block_forward.2} parent=0 // pred_region
    _
  $region33: #{decoder_block_forward.2} parent=0 // pred_fallthru
    _
  // Predicated region
  $region34: #{decoder_block_forward.2} parent=0 // pred_check
    _
  $region35: #{decoder_block_forward.2} parent=0 // pred_check_branch
    %595 = sbr.rel (0) target = $region37
  $region36: #{decoder_block_forward.2} parent=0 // pred_region
    _
  $region37: #{decoder_block_forward.2} parent=0 // pred_fallthru
    _

// kernel: decoder_block_forward.3
$region0: #{decoder_block_forward.3}
  #allocation0 [shape = 'u32[]', space=smem, size = 0x4, offset = 0x4, fixed_abs, tag = 'smem constant byte address 0x4 - core index']
  #allocation1 [shape = 'u32[144,128]{1,0:T(1,128)}', space=vmem, size = 0x12000, scoped, tag = 'internal scratch']
  %s0 = inlined_call_operand.vmem [shape: bf16[32,576], index: 0, kind: input, shape index: {}]
  %s1 = inlined_call_operand.vmem [shape: bf16[576,128], index: 1, kind: input, shape index: {}]
  %s2 = inlined_call_operand.vmem [shape: bf16[32,128], index: 2, kind: output, shape index: {0}]
  %s3 = inlined_call_operand.vmem [shape: f32[1,128], index: 3, kind: output, shape index: {1}]
  %s4 = inlined_call_operand.vmem [shape: f32[1,128], index: 4, kind: output, shape index: {2}]
  %5 = xla_tuple %s2, %s3, %s4
  %s6 = sld [smem:[#allocation0]]
  $region38: #{decoder_block_forward.3} parent=0
    _
  %s8 = ssub.s32 1, %s6
  %s9 = scalar_select 0, %s8, %s6
  // Predicated region
  $region2: #{decoder_block_forward.3} parent=0 // pred_check
    _
  $region3: #{decoder_block_forward.3} parent=0 // pred_check_branch
    %11 = sbr.rel (0) target = $region5
  $region4: #{decoder_block_forward.3} parent=0 // pred_region
    _
  $region5: #{decoder_block_forward.3} parent=0 // pred_fallthru
    _
  // Predicated region
  $region6: #{decoder_block_forward.3} parent=0 // pred_check
    _
  $region7: #{decoder_block_forward.3} parent=0 // pred_check_branch
    %13 = sbr.rel (0) target = $region9
  $region8: #{decoder_block_forward.3} parent=0 // pred_region
    _
  $region9: #{decoder_block_forward.3} parent=0 // pred_fallthru
    _
  %v15 = vld [vmem:[%s0] sm:$0xff]
  %v16 = vld [vmem:[%s0 + $0x8] sm:$0xff]
  %v17 = vld [vmem:[%s0 + $0x10] sm:$0xf]
  %v18 = vld [vmem:[%s0 + $0x14] sm:$0xff]
  %v19 = vld [vmem:[%s0 + $0x1c] sm:$0xff]
  %v20 = vld [vmem:[%s0 + $0x24] sm:$0xf]
  %v21 = vld [vmem:[%s0 + $0x28] sm:$0xff]
  %v22 = vld [vmem:[%s0 + $0x30] sm:$0xff]
  %v23 = vld [vmem:[%s0 + $0x38] sm:$0xf]
  %v24 = vld [vmem:[%s0 + $0x3c] sm:$0xff]
  %v25 = vld [vmem:[%s0 + $0x44] sm:$0xff]
  %v26 = vld [vmem:[%s0 + $0x4c] sm:$0xf]
  %v27 = vld [vmem:[%s1] sm:$0xf]
  %v28 = vld [vmem:[%s1 + $0x4] sm:$0xf]
  %v29 = vld [vmem:[%s1 + $0x8] sm:$0xf]
  %v30 = vld [vmem:[%s1 + $0xc] sm:$0xf]
  %v31 = vld [vmem:[%s1 + $0x10] sm:$0xf]
  %v32 = vld [vmem:[%s1 + $0x14] sm:$0xf]
  %v33 = vld [vmem:[%s1 + $0x18] sm:$0xf]
  %v34 = vld [vmem:[%s1 + $0x1c] sm:$0xf]
  %v35 = vld [vmem:[%s1 + $0x20] sm:$0xf]
  %v36 = vld [vmem:[%s1 + $0x24] sm:$0xf]
  %v37 = vld [vmem:[%s1 + $0x28] sm:$0xf]
  %v38 = vld [vmem:[%s1 + $0x2c] sm:$0xf]
  %v39 = vld [vmem:[%s1 + $0x30] sm:$0xf]
  %v40 = vld [vmem:[%s1 + $0x34] sm:$0xf]
  %v41 = vld [vmem:[%s1 + $0x38] sm:$0xf]
  %v42 = vld [vmem:[%s1 + $0x3c] sm:$0xf]
  %v43 = vld [vmem:[%s1 + $0x40] sm:$0xf]
  %v44 = vld [vmem:[%s1 + $0x44] sm:$0xf]
  %v45 = vld [vmem:[%s1 + $0x48] sm:$0xf]
  %v46 = vld [vmem:[%s1 + $0x4c] sm:$0xf]
  %v47 = vld [vmem:[%s1 + $0x50] sm:$0xf]
  %v48 = vld [vmem:[%s1 + $0x54] sm:$0xf]
  %v49 = vld [vmem:[%s1 + $0x58] sm:$0xf]
  %v50 = vld [vmem:[%s1 + $0x5c] sm:$0xf]
  %v51 = vld [vmem:[%s1 + $0x60] sm:$0xf]
  %v52 = vld [vmem:[%s1 + $0x64] sm:$0xf]
  %v53 = vld [vmem:[%s1 + $0x68] sm:$0xf]
  %v54 = vld [vmem:[%s1 + $0x6c] sm:$0xf]
  %v55 = vld [vmem:[%s1 + $0x70] sm:$0xf]
  %v56 = vld [vmem:[%s1 + $0x74] sm:$0xf]
  %v57 = vld [vmem:[%s1 + $0x78] sm:$0xf]
  %v58 = vld [vmem:[%s1 + $0x7c] sm:$0xf]
  %v59 = vld [vmem:[%s1 + $0x80] sm:$0xf]
  %v60 = vld [vmem:[%s1 + $0x84] sm:$0xf]
  %v61 = vld [vmem:[%s1 + $0x88] sm:$0xf]
  %v62 = vld [vmem:[%s1 + $0x8c] sm:$0xf]
  %v63 = vld [vmem:[%s1 + $0x90] sm:$0xf]
  %v64 = vld [vmem:[%s1 + $0x94] sm:$0xf]
  %v65 = vld [vmem:[%s1 + $0x98] sm:$0xf]
  %v66 = vld [vmem:[%s1 + $0x9c] sm:$0xf]
  %v67 = vld [vmem:[%s1 + $0xa0] sm:$0xf]
  %v68 = vld [vmem:[%s1 + $0xa4] sm:$0xf]
  %v69 = vld [vmem:[%s1 + $0xa8] sm:$0xf]
  %v70 = vld [vmem:[%s1 + $0xac] sm:$0xf]
  %v71 = vld [vmem:[%s1 + $0xb0] sm:$0xf]
  %v72 = vld [vmem:[%s1 + $0xb4] sm:$0xf]
  %v73 = vld [vmem:[%s1 + $0xb8] sm:$0xf]
  %v74 = vld [vmem:[%s1 + $0xbc] sm:$0xf]
  %v75 = vld [vmem:[%s1 + $0xc0] sm:$0xf]
  %v76 = vld [vmem:[%s1 + $0xc4] sm:$0xf]
  %v77 = vld [vmem:[%s1 + $0xc8] sm:$0xf]
  %v78 = vld [vmem:[%s1 + $0xcc] sm:$0xf]
  %v79 = vld [vmem:[%s1 + $0xd0] sm:$0xf]
  %v80 = vld [vmem:[%s1 + $0xd4] sm:$0xf]
  %v81 = vld [vmem:[%s1 + $0xd8] sm:$0xf]
  %v82 = vld [vmem:[%s1 + $0xdc] sm:$0xf]
  %v83 = vld [vmem:[%s1 + $0xe0] sm:$0xf]
  %v84 = vld [vmem:[%s1 + $0xe4] sm:$0xf]
  %v85 = vld [vmem:[%s1 + $0xe8] sm:$0xf]
  %v86 = vld [vmem:[%s1 + $0xec] sm:$0xf]
  %v87 = vld [vmem:[%s1 + $0xf0] sm:$0xf]
  %v88 = vld [vmem:[%s1 + $0xf4] sm:$0xf]
  %v89 = vld [vmem:[%s1 + $0xf8] sm:$0xf]
  %v90 = vld [vmem:[%s1 + $0xfc] sm:$0xf]
  %v91 = vld [vmem:[%s1 + $0x100] sm:$0xf]
  %v92 = vld [vmem:[%s1 + $0x104] sm:$0xf]
  %v93 = vld [vmem:[%s1 + $0x108] sm:$0xf]
  %v94 = vld [vmem:[%s1 + $0x10c] sm:$0xf]
  %v95 = vld [vmem:[%s1 + $0x110] sm:$0xf]
  %v96 = vld [vmem:[%s1 + $0x114] sm:$0xf]
  %v97 = vld [vmem:[%s1 + $0x118] sm:$0xf]
  %v98 = vld [vmem:[%s1 + $0x11c] sm:$0xf]
  %v111 = vunpack.c.l.b16 %v15
  %v112 = vunpack.c.h.b16 %v15
  %v113 = vunpack.c.l.b16 %v16
  %v114 = vunpack.c.h.b16 %v16
  %v115 = vunpack.c.l.b16 %v17
  %v116 = vunpack.c.l.b16 %v18
  %v117 = vunpack.c.h.b16 %v18
  %v118 = vunpack.c.l.b16 %v19
  %v119 = vunpack.c.h.b16 %v19
  %v120 = vunpack.c.l.b16 %v20
  %v121 = vunpack.c.l.b16 %v21
  %v122 = vunpack.c.h.b16 %v21
  %v123 = vunpack.c.l.b16 %v22
  %v124 = vunpack.c.h.b16 %v22
  %v125 = vunpack.c.l.b16 %v23
  %v126 = vunpack.c.l.b16 %v24
  %v127 = vunpack.c.h.b16 %v24
  %v128 = vunpack.c.l.b16 %v25
  %v129 = vunpack.c.h.b16 %v25
  %v130 = vunpack.c.l.b16 %v26
  %v131 = vpack.c.b16 %v116, %v111
  %v132 = vpack.c.b16 %v117, %v112
  %v133 = vpack.c.b16 %v118, %v113
  %v134 = vpack.c.b16 %v119, %v114
  %v135 = vpack.c.b16 %v120, %v115
  %v136 = vpack.c.b16 %v126, %v121
  %v137 = vpack.c.b16 %v127, %v122
  %v138 = vpack.c.b16 %v128, %v123
  %v139 = vpack.c.b16 %v129, %v124
  %v140 = vpack.c.b16 %v130, %v125
  %v221 = vunpack.c.l.b16 %v27
  %v222 = vunpack.c.l.b16 %v28
  %v223 = vunpack.c.l.b16 %v29
  %v224 = vunpack.c.l.b16 %v30
  %v225 = vunpack.c.l.b16 %v31
  %v226 = vunpack.c.l.b16 %v32
  %v227 = vunpack.c.l.b16 %v33
  %v228 = vunpack.c.l.b16 %v34
  %v229 = vunpack.c.l.b16 %v35
  %v230 = vunpack.c.l.b16 %v36
  %v231 = vunpack.c.l.b16 %v37
  %v232 = vunpack.c.l.b16 %v38
  %v233 = vunpack.c.l.b16 %v39
  %v234 = vunpack.c.l.b16 %v40
  %v235 = vunpack.c.l.b16 %v41
  %v236 = vunpack.c.l.b16 %v42
  %v237 = vunpack.c.l.b16 %v43
  %v238 = vunpack.c.l.b16 %v44
  %v239 = vunpack.c.l.b16 %v45
  %v240 = vunpack.c.l.b16 %v46
  %v241 = vunpack.c.l.b16 %v47
  %v242 = vunpack.c.l.b16 %v48
  %v243 = vunpack.c.l.b16 %v49
  %v244 = vunpack.c.l.b16 %v50
  %v245 = vunpack.c.l.b16 %v51
  %v246 = vunpack.c.l.b16 %v52
  %v247 = vunpack.c.l.b16 %v53
  %v248 = vunpack.c.l.b16 %v54
  %v249 = vunpack.c.l.b16 %v55
  %v250 = vunpack.c.l.b16 %v56
  %v251 = vunpack.c.l.b16 %v57
  %v252 = vunpack.c.l.b16 %v58
  %v253 = vunpack.c.l.b16 %v59
  %v254 = vunpack.c.l.b16 %v60
  %v255 = vunpack.c.l.b16 %v61
  %v256 = vunpack.c.l.b16 %v62
  %v257 = vunpack.c.l.b16 %v63
  %v258 = vunpack.c.l.b16 %v64
  %v259 = vunpack.c.l.b16 %v65
  %v260 = vunpack.c.l.b16 %v66
  %v261 = vunpack.c.l.b16 %v67
  %v262 = vunpack.c.l.b16 %v68
  %v263 = vunpack.c.l.b16 %v69
  %v264 = vunpack.c.l.b16 %v70
  %v265 = vunpack.c.l.b16 %v71
  %v266 = vunpack.c.l.b16 %v72
  %v267 = vunpack.c.l.b16 %v73
  %v268 = vunpack.c.l.b16 %v74
  %v269 = vunpack.c.l.b16 %v75
  %v270 = vunpack.c.l.b16 %v76
  %v271 = vunpack.c.l.b16 %v77
  %v272 = vunpack.c.l.b16 %v78
  %v273 = vunpack.c.l.b16 %v79
  %v274 = vunpack.c.l.b16 %v80
  %v275 = vunpack.c.l.b16 %v81
  %v276 = vunpack.c.l.b16 %v82
  %v277 = vunpack.c.l.b16 %v83
  %v278 = vunpack.c.l.b16 %v84
  %v279 = vunpack.c.l.b16 %v85
  %v280 = vunpack.c.l.b16 %v86
  %v281 = vunpack.c.l.b16 %v87
  %v282 = vunpack.c.l.b16 %v88
  %v283 = vunpack.c.l.b16 %v89
  %v284 = vunpack.c.l.b16 %v90
  %v285 = vunpack.c.l.b16 %v91
  %v286 = vunpack.c.l.b16 %v92
  %v287 = vunpack.c.l.b16 %v93
  %v288 = vunpack.c.l.b16 %v94
  %v289 = vunpack.c.l.b16 %v95
  %v290 = vunpack.c.l.b16 %v96
  %v291 = vunpack.c.l.b16 %v97
  %v292 = vunpack.c.l.b16 %v98
  %v293 = vpack.c.b16 %v222, %v221
  %v294 = vpack.c.b16 %v224, %v223
  %v295 = vpack.c.b16 %v226, %v225
  %v296 = vpack.c.b16 %v228, %v227
  %v297 = vpack.c.b16 %v230, %v229
  %v298 = vpack.c.b16 %v232, %v231
  %v299 = vpack.c.b16 %v234, %v233
  %v300 = vpack.c.b16 %v236, %v235
  %v301 = vpack.c.b16 %v238, %v237
  %v302 = vpack.c.b16 %v240, %v239
  %v303 = vpack.c.b16 %v242, %v241
  %v304 = vpack.c.b16 %v244, %v243
  %v305 = vpack.c.b16 %v246, %v245
  %v306 = vpack.c.b16 %v248, %v247
  %v307 = vpack.c.b16 %v250, %v249
  %v308 = vpack.c.b16 %v252, %v251
  %v309 = vpack.c.b16 %v254, %v253
  %v310 = vpack.c.b16 %v256, %v255
  %v311 = vpack.c.b16 %v258, %v257
  %v312 = vpack.c.b16 %v260, %v259
  %v313 = vpack.c.b16 %v262, %v261
  %v314 = vpack.c.b16 %v264, %v263
  %v315 = vpack.c.b16 %v266, %v265
  %v316 = vpack.c.b16 %v268, %v267
  %v317 = vpack.c.b16 %v270, %v269
  %v318 = vpack.c.b16 %v272, %v271
  %v319 = vpack.c.b16 %v274, %v273
  %v320 = vpack.c.b16 %v276, %v275
  %v321 = vpack.c.b16 %v278, %v277
  %v322 = vpack.c.b16 %v280, %v279
  %v323 = vpack.c.b16 %v282, %v281
  %v324 = vpack.c.b16 %v284, %v283
  %v325 = vpack.c.b16 %v286, %v285
  %v326 = vpack.c.b16 %v288, %v287
  %v327 = vpack.c.b16 %v290, %v289
  %v328 = vpack.c.b16 %v292, %v291
  %vm365 = vcmask 523264
  %v367 = vsel %vm365, %v135, 0
  %v370 = vsel %vm365, %v140, 0
  %372 = vmatprep.subr.bf16.mxu0 0
  %373 = vmatpush1.bf16.msra.mxu0 %v293
  %374 = vmatprep.subr.bf16.mxu0 0
  %375 = vmatpush1.bf16.msra.mxu0 %v294
  %376 = vmatprep.subr.bf16.mxu0 0
  %377 = vmatpush1.bf16.msra.mxu0 %v295
  %378 = vmatprep.subr.bf16.mxu0 0
  %379 = vmatpush1.bf16.msra.mxu0 %v296
  %380 = vmatprep.subr.bf16.mxu0 0
  %381 = vmatpush1.bf16.msra.mxu0 %v297
  %382 = vmatprep.subr.bf16.mxu0 0
  %383 = vmatpush1.bf16.msra.mxu0 %v298
  %384 = vmatprep.subr.bf16.mxu0 0
  %385 = vmatpush1.bf16.msra.mxu0 %v299
  %386 = vmatprep.subr.bf16.mxu0 0
  %387 = vmatpush1.bf16.msra.mxu0 %v300
  %388 = vmatprep.subr.bf16.mxu0 0
  %389 = vmatpush1.bf16.msra.mxu0 %v301
  %390 = vmatprep.subr.bf16.mxu0 0
  %391 = vmatpush1.bf16.msra.mxu0 %v302
  %392 = vmatprep.subr.bf16.mxu0 0
  %393 = vmatpush1.bf16.msra.mxu0 %v303
  %394 = vmatprep.subr.bf16.mxu0 0
  %395 = vmatpush1.bf16.msra.mxu0 %v304
  %396 = vmatprep.subr.bf16.mxu0 0
  %397 = vmatpush1.bf16.msra.mxu0 %v305
  %398 = vmatprep.subr.bf16.mxu0 0
  %399 = vmatpush1.bf16.msra.mxu0 %v306
  %400 = vmatprep.subr.bf16.mxu0 0
  %401 = vmatpush1.bf16.msra.mxu0 %v307
  %402 = vmatprep.subr.bf16.mxu0 0
  %403 = vmatpush1.bf16.msra.mxu0 %v308
  %404 = vmatprep.mubr.bf16.mxu0 %v132
  %405 = vmatmul.mubr.bf16.gmra.mrb[0].mxu0 %v131
  %v406 = vpop.f32.mrb[0].mxu0
  %v407 = vadd.f32 0.0, %v406
  %v408 = vpop.f32.mrb[0].mxu0
  %v409 = vpop.f32.mrb[0].mxu0
  %v410 = vadd.f32 0.0, %v409
  %v411 = vpop.f32.mrb[0].mxu0
  %412 = vmatprep.mubr.bf16.mxu0 %v137
  %413 = vmatmul.mubr.bf16.gmra.mrb[0].mxu0 %v136
  %v414 = vpop.f32.mrb[0].mxu0
  %v415 = vadd.f32 0.0, %v414
  %v416 = vpop.f32.mrb[0].mxu0
  %v417 = vpop.f32.mrb[0].mxu0
  %v418 = vadd.f32 0.0, %v417
  %v419 = vpop.f32.mrb[0].mxu0
  %420 = vdwg.mxu0
  %421 = vmatprep.subr.bf16.mxu0 0
  %422 = vmatpush1.bf16.msra.mxu0 %v309
  %423 = vmatprep.subr.bf16.mxu0 0
  %424 = vmatpush1.bf16.msra.mxu0 %v310
  %425 = vmatprep.subr.bf16.mxu0 0
  %426 = vmatpush1.bf16.msra.mxu0 %v311
  %427 = vmatprep.subr.bf16.mxu0 0
  %428 = vmatpush1.bf16.msra.mxu0 %v312
  %429 = vmatprep.subr.bf16.mxu0 0
  %430 = vmatpush1.bf16.msra.mxu0 %v313
  %431 = vmatprep.subr.bf16.mxu0 0
  %432 = vmatpush1.bf16.msra.mxu0 %v314
  %433 = vmatprep.subr.bf16.mxu0 0
  %434 = vmatpush1.bf16.msra.mxu0 %v315
  %435 = vmatprep.subr.bf16.mxu0 0
  %436 = vmatpush1.bf16.msra.mxu0 %v316
  %437 = vmatprep.subr.bf16.mxu0 0
  %438 = vmatpush1.bf16.msra.mxu0 %v317
  %439 = vmatprep.subr.bf16.mxu0 0
  %440 = vmatpush1.bf16.msra.mxu0 %v318
  %441 = vmatprep.subr.bf16.mxu0 0
  %442 = vmatpush1.bf16.msra.mxu0 %v319
  %443 = vmatprep.subr.bf16.mxu0 0
  %444 = vmatpush1.bf16.msra.mxu0 %v320
  %445 = vmatprep.subr.bf16.mxu0 0
  %446 = vmatpush1.bf16.msra.mxu0 %v321
  %447 = vmatprep.subr.bf16.mxu0 0
  %448 = vmatpush1.bf16.msra.mxu0 %v322
  %449 = vmatprep.subr.bf16.mxu0 0
  %450 = vmatpush1.bf16.msra.mxu0 %v323
  %451 = vmatprep.subr.bf16.mxu0 0
  %452 = vmatpush1.bf16.msra.mxu0 %v324
  %453 = vmatprep.mubr.bf16.mxu0 %v134
  %454 = vmatmul.mubr.bf16.gmra.mrb[0].mxu0 %v133
  %v455 = vpop.f32.mrb[0].mxu0
  %v456 = vadd.f32 %v407, %v455
  %v457 = vpop.f32.mrb[0].mxu0
  %v458 = vpop.f32.mrb[0].mxu0
  %v459 = vadd.f32 %v410, %v458
  %v460 = vpop.f32.mrb[0].mxu0
  %461 = vmatprep.mubr.bf16.mxu0 %v139
  %462 = vmatmul.mubr.bf16.gmra.mrb[0].mxu0 %v138
  %v463 = vpop.f32.mrb[0].mxu0
  %v464 = vadd.f32 %v415, %v463
  %v465 = vpop.f32.mrb[0].mxu0
  %v466 = vpop.f32.mrb[0].mxu0
  %v467 = vadd.f32 %v418, %v466
  %v468 = vpop.f32.mrb[0].mxu0
  %469 = vdwg.mxu0
  %470 = vmatprep.subr.bf16.mxu0 0
  %471 = vmatpush1.bf16.msra.mxu0 %v325
  %472 = vmatprep.subr.bf16.mxu0 0
  %473 = vmatpush1.bf16.msra.mxu0 %v326
  %474 = vmatprep.subr.bf16.mxu0 0
  %475 = vmatpush1.bf16.msra.mxu0 %v327
  %476 = vmatprep.subr.bf16.mxu0 0
  %477 = vmatpush1.bf16.msra.mxu0 %v328
  %478 = vmatprep.subr.bf16.mxu0 0
  %479 = vmatpush1.bf16.msra.mxu0 0
  %480 = vmatprep.subr.bf16.mxu0 0
  %481 = vmatpush1.bf16.msra.mxu0 0
  %482 = vmatprep.subr.bf16.mxu0 0
  %483 = vmatpush1.bf16.msra.mxu0 0
  %484 = vmatprep.subr.bf16.mxu0 0
  %485 = vmatpush1.bf16.msra.mxu0 0
  %486 = vmatprep.subr.bf16.mxu0 0
  %487 = vmatpush1.bf16.msra.mxu0 0
  %488 = vmatprep.subr.bf16.mxu0 0
  %489 = vmatpush1.bf16.msra.mxu0 0
  %490 = vmatprep.subr.bf16.mxu0 0
  %491 = vmatpush1.bf16.msra.mxu0 0
  %492 = vmatprep.subr.bf16.mxu0 0
  %493 = vmatpush1.bf16.msra.mxu0 0
  %494 = vmatprep.subr.bf16.mxu0 0
  %495 = vmatpush1.bf16.msra.mxu0 0
  %496 = vmatprep.subr.bf16.mxu0 0
  %497 = vmatpush1.bf16.msra.mxu0 0
  %498 = vmatprep.subr.bf16.mxu0 0
  %499 = vmatpush1.bf16.msra.mxu0 0
  %500 = vmatprep.subr.bf16.mxu0 0
  %501 = vmatpush1.bf16.msra.mxu0 0
  %502 = vmatprep.mubr.bf16.mxu0 0
  %503 = vmatmul.mubr.bf16.gmra.mrb[0].mxu0 %v367
  %v504 = vpop.f32.mrb[0].mxu0
  %v505 = vadd.f32 %v456, %v504
  %v506 = vpop.f32.mrb[0].mxu0
  %v507 = vpop.f32.mrb[0].mxu0
  %v508 = vadd.f32 %v459, %v507
  %v509 = vpop.f32.mrb[0].mxu0
  %510 = vmatprep.mubr.bf16.mxu0 0
  %511 = vmatmul.mubr.bf16.gmra.mrb[0].mxu0 %v370
  %v512 = vpop.f32.mrb[0].mxu0
  %v513 = vadd.f32 %v464, %v512
  %v514 = vpop.f32.mrb[0].mxu0
  %v515 = vpop.f32.mrb[0].mxu0
  %v516 = vadd.f32 %v467, %v515
  %v517 = vpop.f32.mrb[0].mxu0
  %518 = vdwg.mxu0
  %v519 = vpack.c.bf16 %v508, %v505
  %v520 = vpack.c.bf16 %v516, %v513
  %v523 = vunpack.c.l.b16 %v519
  %v524 = vunpack.c.h.b16 %v519
  %v525 = vunpack.c.l.b16 %v520
  %v526 = vunpack.c.h.b16 %v520
  %v527 = vpack.c.b16 %v523, %v523
  %v528 = vpack.c.b16 %v524, %v524
  %v529 = vpack.c.b16 %v525, %v525
  %v530 = vpack.c.b16 %v526, %v526
  %535 = vst [vmem:[%s2] sm:$0xf] %v527
  %536 = vst [vmem:[%s2 + $0x4] sm:$0xf] %v528
  %537 = vst [vmem:[%s2 + $0x8] sm:$0xf] %v529
  %538 = vst [vmem:[%s2 + $0xc] sm:$0xf] %v530
  %p539 = scmp.eq.s32.totalorder 0, 0
  // Predicated region
  $region10: #{decoder_block_forward.3} parent=0 // pred_check
    %p540 = pneg %p539
  $region11: #{decoder_block_forward.3} parent=0 // pred_check_branch
    %542 = sbr.rel (%p540) target = $region13
  $region12: #{decoder_block_forward.3} parent=0 // pred_region
    %543 = vst [vmem:[%s3] sm:$0x1] 0.0
    %544 = vst [vmem:[%s4] sm:$0x1] 0.0
  $region13: #{decoder_block_forward.3} parent=0 // pred_fallthru
    _
  %v545 = vld [vmem:[%s3] sm:$0x1]
  %v546 = vadd.f32 %v505, %v508
  %v547 = vadd.f32 %v546, %v513
  %v548 = vadd.f32 %v547, %v516
  %v549 = vrot.slane %v548, 4
  %v550 = vadd.f32 %v548, %v549
  %v551 = vrot.slane %v550, 2
  %v552 = vadd.f32 %v550, %v551
  %v553 = vrot.slane %v552, 1
  %v554 = vadd.f32 %v552, %v553
  %v555 = vadd.f32 %v545, %v554
  %556 = vst [vmem:[%s3] sm:$0x1] %v555
  %v557 = vld [vmem:[%s4] sm:$0x1]
  %v558 = vmul.f32 %v505, %v505
  %v559 = vmul.f32 %v508, %v508
  %v560 = vmul.f32 %v513, %v513
  %v561 = vmul.f32 %v516, %v516
  %v562 = vadd.f32 %v558, %v559
  %v563 = vadd.f32 %v562, %v560
  %v564 = vadd.f32 %v563, %v561
  %v565 = vrot.slane %v564, 4
  %v566 = vadd.f32 %v564, %v565
  %v567 = vrot.slane %v566, 2
  %v568 = vadd.f32 %v566, %v567
  %v569 = vrot.slane %v568, 1
  %v570 = vadd.f32 %v568, %v569
  %v571 = vadd.f32 %v557, %v570
  %572 = vst [vmem:[%s4] sm:$0x1] %v571
  // Predicated region
  $region14: #{decoder_block_forward.3} parent=0 // pred_check
    _
  $region15: #{decoder_block_forward.3} parent=0 // pred_check_branch
    %574 = sbr.rel (0) target = $region17
  $region16: #{decoder_block_forward.3} parent=0 // pred_region
    _
  $region17: #{decoder_block_forward.3} parent=0 // pred_fallthru
    _
  // Predicated region
  $region18: #{decoder_block_forward.3} parent=0 // pred_check
    _
  $region19: #{decoder_block_forward.3} parent=0 // pred_check_branch
    %576 = sbr.rel (0) target = $region21
  $region20: #{decoder_block_forward.3} parent=0 // pred_region
    _
  $region21: #{decoder_block_forward.3} parent=0 // pred_fallthru
    _
  // Predicated region
  $region22: #{decoder_block_forward.3} parent=0 // pred_check
    _
  $region23: #{decoder_block_forward.3} parent=0 // pred_check_branch
    %578 = sbr.rel (0) target = $region25
  $region24: #{decoder_block_forward.3} parent=0 // pred_region
    _
  $region25: #{decoder_block_forward.3} parent=0 // pred_fallthru
    _
  // Predicated region
  $region26: #{decoder_block_forward.3} parent=0 // pred_check
    _
  $region27: #{decoder_block_forward.3} parent=0 // pred_check_branch
    %580 = sbr.rel (0) target = $region29
  $region28: #{decoder_block_forward.3} parent=0 // pred_region
    _
  $region29: #{decoder_block_forward.3} parent=0 // pred_fallthru
    _
  // Predicated region
  $region30: #{decoder_block_forward.3} parent=0 // pred_check
    _
  $region31: #{decoder_block_forward.3} parent=0 // pred_check_branch
    %582 = sbr.rel (0) target = $region33
  $region32: #{decoder_block_forward.3} parent=0 // pred_region
    _
  $region33: #{decoder_block_forward.3} parent=0 // pred_fallthru
    _
  // Predicated region
  $region34: #{decoder_block_forward.3} parent=0 // pred_check
    _
  $region35: #{decoder_block_forward.3} parent=0 // pred_check_branch
    %584 = sbr.rel (0) target = $region37
  $region36: #{decoder_block_forward.3} parent=0 // pred_region
    _
  $region37: #{decoder_block_forward.3} parent=0 // pred_fallthru
    _

</llo_original>
